<compile_context>
chip_gen: v7x
topology: tpu7x:2x2x1
jax: 0.10.0
libtpu: 0.0.40
codegen_flags: <defaults>
</compile_context>

<pallas_src>
import jax
import jax.numpy as jnp
from jax.experimental import pallas as pl
from jax.experimental.pallas import tpu as pltpu


def _round_up(x, m):
    return (x + m - 1) // m * m


# ---------------------------------------------------------------------------
# Generic tiled multi-stream matmul on 2-D operands:
#   for each output o:  y_o = sum_i xs[i] @ W[o][i] + b[o]
# Used for: GRU input projections (both directions at once, concat-free), the
# final Linear (consumes h_fwd / h_bwd as two streams), and Conv1x3 (three
# time-shifted streams = the three taps).
# Outputs are lane-dense: each K_o is zero-padded to a multiple of 128.
# ---------------------------------------------------------------------------
def multi_linear(xs, weight_groups, biases, *,
                 compute_dtype=jnp.bfloat16,
                 out_dtype=jnp.float32,
                 tile_budget_bytes=24 * 1024 * 1024,
                 max_tile_rows=1024,
                 vmem_limit_bytes=48 * 1024 * 1024):
    """xs[i]: (M, D_i).  weight_groups[o][i]: (D_i, K_o).  biases[o]: (K_o,).
    Returns list of (M, round_up(K_o, 128)) arrays in out_dtype (extra cols zero)."""
    n_in = len(xs)
    n_out = len(weight_groups)
    M = xs[0].shape[0]
    Ds = [x.shape[1] for x in xs]
    Ks = [wg[0].shape[1] for wg in weight_groups]
    Kps = [_round_up(k, 128) for k in Ks]

    # Pad output widths to 128 (lane-dense stores) and cast weights to bf16 once.
    w_list, b_list = [], []
    for o in range(n_out):
        for i in range(n_in):
            wp = jnp.zeros((Ds[i], Kps[o]), compute_dtype)
            wp = wp.at[:, :Ks[o]].set(weight_groups[o][i].astype(compute_dtype))
            w_list.append(wp)
        bp = jnp.zeros((1, Kps[o]), jnp.float32)
        bp = bp.at[0, :Ks[o]].set(biases[o].astype(jnp.float32))
        b_list.append(bp)

    # Derive the row tile from a VMEM budget (double-buffered inputs + outputs).
    in_bytes = sum(int(jnp.dtype(x.dtype).itemsize) * x.shape[1] for x in xs)
    out_bytes = sum(int(jnp.dtype(out_dtype).itemsize) * kp for kp in Kps)
    bytes_per_row = 2 * (in_bytes + out_bytes)
    w_bytes = 2 * sum(int(jnp.dtype(compute_dtype).itemsize) * Ds[i] * Kps[o]
                      for o in range(n_out) for i in range(n_in))
    avail = max(tile_budget_bytes - w_bytes, 1 << 20)
    tile_rows = max(8, min(max_tile_rows, avail // max(bytes_per_row, 1)))
    tile_rows -= tile_rows % 8
    Rt = M if M <= tile_rows else tile_rows
    nr = pl.cdiv(M, Rt)

    def kernel(*refs):
        x_refs = refs[:n_in]
        w_refs = refs[n_in:n_in + n_in * n_out]
        b_refs = refs[n_in + n_in * n_out:n_in + n_in * n_out + n_out]
        o_refs = refs[n_in + n_in * n_out + n_out:]
        xv = [r[...].astype(compute_dtype) for r in x_refs]
        for o in range(n_out):
            acc = jnp.dot(xv[0], w_refs[o * n_in][...],
                          preferred_element_type=jnp.float32)
            for i in range(1, n_in):
                acc = acc + jnp.dot(xv[i], w_refs[o * n_in + i][...],
                                    preferred_element_type=jnp.float32)
            o_refs[o][...] = (acc + b_refs[o][...]).astype(o_refs[o].dtype)

    in_specs = (
        [pl.BlockSpec((Rt, d), lambda r: (r, 0)) for d in Ds]
        + [pl.BlockSpec(w.shape, lambda r: (0, 0)) for w in w_list]
        + [pl.BlockSpec(b.shape, lambda r: (0, 0)) for b in b_list]
    )
    out_specs = tuple(pl.BlockSpec((Rt, kp), lambda r: (r, 0)) for kp in Kps)
    out_shape = tuple(jax.ShapeDtypeStruct((M, kp), out_dtype) for kp in Kps)

    outs = pl.pallas_call(
        kernel,
        out_shape=out_shape,
        grid_spec=pltpu.PrefetchScalarGridSpec(
            num_scalar_prefetch=0,
            grid=(nr,),
            in_specs=in_specs,
            out_specs=out_specs,
        ),
        compiler_params=pltpu.CompilerParams(
            dimension_semantics=("parallel",),
            vmem_limit_bytes=vmem_limit_bytes),
    )(*xs, *w_list, *b_list)
    return list(outs)


# ---------------------------------------------------------------------------
# Fused bidirectional GRU recurrence (both directions in one kernel, chunked T).
# gi_f / gi_b are the precomputed input projections (with b_ih and b_hr/b_hz
# already folded in).  The backward direction uses reversed index_maps (no flip).
# Both directions share ONE per-step MXU matmul through a block-diagonal
# recurrent weight against a zero-block-structured (2B, 2H) hidden state, and the
# sigmoid/tanh gate math runs stacked on (2B, .) tensors.
# ---------------------------------------------------------------------------
def bigru_recurrence(gi_f, gi_b, w_hh_blk, b_hn_stack, hidden, *,
                     out_dtype=jnp.bfloat16,
                     chunk_t=None,
                     chunk_budget_bytes=16 * 1024 * 1024,
                     vmem_limit_bytes=48 * 1024 * 1024):
    T, B, G3p = gi_f.shape
    H = hidden

    # Derive the time-chunk size from a VMEM budget (double-buffered gi + outputs
    # for both directions).
    per_t = 2 * 2 * B * (G3p * int(jnp.dtype(gi_f.dtype).itemsize)
                         + H * int(jnp.dtype(out_dtype).itemsize))
    if chunk_t is None:
        chunk_t = max(1, min(128, chunk_budget_bytes // max(per_t, 1)))
    Tc = min(T, chunk_t)
    nc = pl.cdiv(T, Tc)
    full_chunks = (T % Tc == 0)

    def kernel(gif_ref, gib_ref, whh_ref, bhn_ref, of_ref, ob_ref, h2_ref):
        c = pl.program_id(0)

        @pl.when(c == 0)
        def _init():
            h2_ref[...] = jnp.zeros_like(h2_ref)

        t0_f = c * Tc                 # global start time of this forward chunk
        t0_b = (nc - 1 - c) * Tc      # global start time of this backward chunk

        @pl.loop(0, Tc)
        def _step(i):
            j = Tc - 1 - i
            # --- both directions stacked on the sublane axis -------------------
            h2 = h2_ref[...]                                          # (2B, 2H)
            # One MXU matmul for both directions: rows [:B] see W_hh_f (cols :H of
            # h2 hold h_f, cols H: are zero); rows [B:] see W_hh_b.
            gh = jnp.dot(h2, whh_ref[...],
                         preferred_element_type=jnp.float32)          # (2B, 3H)
            h = h2[:, :H] + h2[:, H:]                                 # (2B, H) compact
            gi = jnp.concatenate(
                [gif_ref[i].astype(jnp.float32),
                 gib_ref[j].astype(jnp.float32)], axis=0)             # (2B, G3p)
            # PyTorch gate order (r, z, n); n uses r * (W_hn h + b_hn).
            r = jax.nn.sigmoid(gi[:, 0:H] + gh[:, 0:H])
            z = jax.nn.sigmoid(gi[:, H:2 * H] + gh[:, H:2 * H])
            n = jnp.tanh(gi[:, 2 * H:3 * H] + r * (gh[:, 2 * H:3 * H] + bhn_ref[...]))
            h_new = (1.0 - z) * n + z * h                             # (2B, H)

            def write_fwd():
                h2_ref[0:B, 0:H] = h_new[0:B]
                of_ref[i] = h_new[0:B].astype(of_ref.dtype)

            def write_bwd():
                h2_ref[B:2 * B, H:2 * H] = h_new[B:2 * B]
                ob_ref[j] = h_new[B:2 * B].astype(ob_ref.dtype)

            if full_chunks:
                write_fwd()
                write_bwd()
            else:
                pl.when(t0_f + i < T)(write_fwd)
                pl.when(t0_b + j < T)(write_bwd)

    grid_spec = pltpu.PrefetchScalarGridSpec(
        num_scalar_prefetch=0,
        grid=(nc,),
        in_specs=[
            pl.BlockSpec((Tc, B, G3p), lambda c: (c, 0, 0)),            # gi_f chunk
            pl.BlockSpec((Tc, B, G3p), lambda c: (nc - 1 - c, 0, 0)),   # gi_b chunk (reversed)
            pl.BlockSpec((2 * H, 3 * H), lambda c: (0, 0)),             # block-diag W_hh
            pl.BlockSpec((2 * B, H), lambda c: (0, 0)),                 # stacked b_hn
        ],
        out_specs=(
            pl.BlockSpec((Tc, B, H), lambda c: (c, 0, 0)),              # h_fwd chunk
            pl.BlockSpec((Tc, B, H), lambda c: (nc - 1 - c, 0, 0)),     # h_bwd chunk (reversed)
        ),
        scratch_shapes=[pltpu.VMEM((2 * B, 2 * H), jnp.float32)],       # block-structured state
    )
    h_f, h_b = pl.pallas_call(
        kernel,
        out_shape=(jax.ShapeDtypeStruct((T, B, H), out_dtype),
                   jax.ShapeDtypeStruct((T, B, H), out_dtype)),
        grid_spec=grid_spec,
        compiler_params=pltpu.CompilerParams(
            dimension_semantics=("arbitrary",),
            vmem_limit_bytes=vmem_limit_bytes),
    )(gi_f, gi_b, w_hh_blk, b_hn_stack)
    return h_f, h_b


# ---------------------------------------------------------------------------
# Parameter init (deterministic, PyTorch-style uniform bounds)
# ---------------------------------------------------------------------------
def init_params(key, input_size, hidden, num_layers, nclasses):
    keys = iter(jax.random.split(key, 8 * num_layers + 4))
    u = lambda k, shape, bound: jax.random.uniform(k, shape, jnp.float32, -bound, bound)

    gru_bound = 1.0 / float(hidden) ** 0.5
    gru = []
    for layer in range(num_layers):
        lp = {}
        for d in ("f", "b"):
            in_l = input_size if layer == 0 else 2 * hidden
            wih_t = u(next(keys), (in_l, 3 * hidden), gru_bound)   # (W_ir|W_iz|W_in)^T
            whh_t = u(next(keys), (hidden, 3 * hidden), gru_bound)
            b_ih = u(next(keys), (3 * hidden,), gru_bound)
            b_hh = u(next(keys), (3 * hidden,), gru_bound)
            # Pre-split the input weight per input stream so deeper layers consume
            # (h_fwd, h_bwd) directly without materializing a (T,B,2H) concat.
            if layer == 0:
                w_pieces = [wih_t]
            else:
                w_pieces = [wih_t[:hidden], wih_t[hidden:]]
            lp["w_ih_" + d] = w_pieces
            lp["b_ih_" + d] = b_ih
            lp["w_hh_" + d] = whh_t
            lp["b_hh_" + d] = b_hh
        gru.append(lp)

    lin_bound = 1.0 / float(2 * hidden) ** 0.5
    fnl_w_t = u(next(keys), (2 * hidden, nclasses), lin_bound)
    fnl_b = u(next(keys), (nclasses,), lin_bound)

    conv_bound = 1.0 / float(input_size * 3) ** 0.5
    cnn_w = u(next(keys), (3, input_size, nclasses), conv_bound)   # [tap, C, K]
    cnn_b = u(next(keys), (nclasses,), conv_bound)

    return {
        "gru": gru,
        "fnl_w": [fnl_w_t[:hidden], fnl_w_t[hidden:]],   # split for (h_fwd, h_bwd) streams
        "fnl_b": fnl_b,
        "cnn_w": [cnn_w[0], cnn_w[1], cnn_w[2]],          # one (C,K) matrix per tap
        "cnn_b": cnn_b,
    }


# ---------------------------------------------------------------------------
# Forward pass
# ---------------------------------------------------------------------------
def ctc_top_b_forward(x, params, *, compute_dtype=jnp.bfloat16):
    """x: (B, C, H, W) NCHW -> (y_rnn:(W,B,nclasses), y_cnn:(W,B,nclasses))."""
    B, C, _, W = x.shape
    T = W
    hidden = params["gru"][0]["w_hh_f"].shape[0]
    nclasses = params["fnl_b"].shape[0]

    # y = x.permute(2, 3, 0, 1)[0]: only feature-map row 0 matters -> slice first,
    # then transpose to (W, B, C).
    x_seq = jnp.transpose(x[:, :, 0, :], (2, 0, 1)).astype(jnp.float32)   # (T, B, C)

    # Bidirectional multi-layer GRU (dropout p=0.2 between layers: identity in eval)
    streams = [x_seq.reshape(T * B, C)]
    for lp in params["gru"]:
        H = hidden

        def gi_bias(d, lp=lp, H=H):
            # Fold b_ih and the r/z part of b_hh into the precomputed projection so
            # only the b_hn add remains on the serial per-step path.
            b_hh = lp["b_hh_" + d]
            return lp["b_ih_" + d] + jnp.concatenate(
                [b_hh[:2 * H], jnp.zeros((H,), b_hh.dtype)])

        gi_f, gi_b = multi_linear(
            streams,
            weight_groups=[lp["w_ih_f"], lp["w_ih_b"]],
            biases=[gi_bias("f"), gi_bias("b")],
            compute_dtype=compute_dtype,
            out_dtype=jnp.float32)
        G3p = gi_f.shape[1]
        gi_f = gi_f.reshape(T, B, G3p)
        gi_b = gi_b.reshape(T, B, G3p)

        w_hh_blk = jnp.concatenate([lp["w_hh_f"], lp["w_hh_b"]], axis=0)    # (2H, 3H)
        b_hn_stack = jnp.concatenate(
            [jnp.broadcast_to(lp["b_hh_f"][2 * H:], (B, H)),
             jnp.broadcast_to(lp["b_hh_b"][2 * H:], (B, H))], axis=0)       # (2B, H)

        h_f, h_b = bigru_recurrence(gi_f, gi_b, w_hh_blk, b_hn_stack, H,
                                    out_dtype=compute_dtype)
        # No (T,B,2H) concat: the next projection consumes the two streams directly.
        streams = [h_f.reshape(T * B, H), h_b.reshape(T * B, H)]

    # fnl: Dropout(0.5) [identity in eval] + Linear(2H -> nclasses)
    (y_rnn_p,) = multi_linear(streams, weight_groups=[params["fnl_w"]],
                              biases=[params["fnl_b"]],
                              compute_dtype=compute_dtype)
    y_rnn = y_rnn_p.reshape(T, B, -1)[:, :, :nclasses]

    # cnn: Dropout(0.5) [identity] + Conv2d(C->K, (1,3), pad=(0,1)); permute(2,3,0,1)[0]
    # keeps only H-row 0, and kernel height is 1, so only x[:, :, 0, :] matters.
    xp = jnp.pad(x_seq, ((1, 1), (0, 0), (0, 0)))
    taps = [xp[0:T].reshape(T * B, C),
            xp[1:T + 1].reshape(T * B, C),
            xp[2:T + 2].reshape(T * B, C)]          # three time-shifted streams
    (y_cnn_p,) = multi_linear(taps, weight_groups=[params["cnn_w"]],
                              biases=[params["cnn_b"]],
                              compute_dtype=compute_dtype)
    y_cnn = y_cnn_p.reshape(T, B, -1)[:, :, :nclasses]

    return y_rnn, y_cnn


if __name__ == "__main__":
    B, C, Hh, W = 2, 32, 2, 8          # batch, input_size, feature-map height, width(seq)
    hidden, num_layers, nclasses = 32, 2, 16

    key = jax.random.PRNGKey(0)
    kx, kp = jax.random.split(key)
    x = jax.random.normal(kx, (B, C, Hh, W), jnp.float32)
    params = init_params(kp, C, hidden, num_layers, nclasses)

    fwd = jax.jit(ctc_top_b_forward)
    y_rnn, y_cnn = fwd(x, params)
    jax.block_until_ready((y_rnn, y_cnn))

    assert y_rnn.shape == (W, B, nclasses), y_rnn.shape
    assert y_cnn.shape == (W, B, nclasses), y_cnn.shape
    assert jnp.all(jnp.isfinite(y_rnn)) and jnp.all(jnp.isfinite(y_cnn))
    print("KERNEL_OK")
</pallas_src>

<mosaic_0001>
module attributes {stable_mosaic.version = 11 : i64} {
  func.func @kernel(%arg0: i32, %arg1: memref<8x2x128xf32, #tpu.memory_space<vmem>>, %arg2: memref<8x2x128xf32, #tpu.memory_space<vmem>>, %arg3: memref<64x96xf32, #tpu.memory_space<vmem>>, %arg4: memref<4x32xf32, #tpu.memory_space<vmem>>, %arg5: memref<8x2x32xbf16, #tpu.memory_space<vmem>>, %arg6: memref<8x2x32xbf16, #tpu.memory_space<vmem>>, %arg7: memref<4x64xf32, #tpu.memory_space<vmem>>) attributes {dimension_semantics = [#tpu.dimension_semantics<arbitrary>], iteration_bounds = array<i64: 1>, scalar_prefetch = 0 : i64, scratch_operands = 1 : i64, tpu.core_type = #tpu.core_type<tc>, window_params = [{transform_indices = @transform_0, window_bounds = array<i64: 8, 2, 128>}, {transform_indices = @transform_1, window_bounds = array<i64: 8, 2, 128>}, {pipeline_mode = #tpu.pipeline_mode<synchronous>, transform_indices = @transform_2, window_bounds = array<i64: 64, 96>}, {pipeline_mode = #tpu.pipeline_mode<synchronous>, transform_indices = @transform_3, window_bounds = array<i64: 4, 32>}, {transform_indices = @transform_4, window_bounds = array<i64: 8, 2, 32>}, {transform_indices = @transform_5, window_bounds = array<i64: 8, 2, 32>}]} {
    %c0_i32 = arith.constant 0 : i32
    %0 = arith.cmpi eq, %arg0, %c0_i32 : i32
    %1 = arith.extui %0 : i1 to i32
    %c0_i32_0 = arith.constant 0 : i32
    %2 = arith.cmpi ne, %1, %c0_i32_0 : i32
    scf.if %2 {
      %cst = arith.constant 0.000000e+00 : f32
      %4 = vector.broadcast %cst : f32 to vector<4x64xf32>
      %c0 = arith.constant 0 : index
      %c0_3 = arith.constant 0 : index
      %5 = vector.load %arg7[%c0, %c0_3] : memref<4x64xf32, #tpu.memory_space<vmem>>, vector<4x64xf32>
      tpu.vector_store %arg7[%c0, %c0_3], %4 {strides = array<i32>} : memref<4x64xf32, #tpu.memory_space<vmem>>, vector<4x64xf32>,
    } else {
    }
    %c0_i32_1 = arith.constant 0 : i32
    %c8_i32 = arith.constant 8 : i32
    %3 = arith.addi %c0_i32_1, %c8_i32 : i32
    %c1_i32 = arith.constant 1 : i32
    scf.for %arg8 = %c0_i32_1 to %3 step %c1_i32  : i32 {
      %c1_i32_3 = arith.constant 1 : i32
      %4 = arith.muli %arg8, %c1_i32_3 : i32
      %c0_i32_4 = arith.constant 0 : i32
      %5 = arith.addi %c0_i32_4, %4 : i32
      %c7_i32 = arith.constant 7 : i32
      %6 = arith.subi %c7_i32, %5 : i32
      %c0 = arith.constant 0 : index
      %c0_5 = arith.constant 0 : index
      %7 = vector.load %arg7[%c0, %c0_5] : memref<4x64xf32, #tpu.memory_space<vmem>>, vector<4x64xf32>
      %c0_6 = arith.constant 0 : index
      %c0_7 = arith.constant 0 : index
      %8 = vector.load %arg3[%c0_6, %c0_7] : memref<64x96xf32, #tpu.memory_space<vmem>>, vector<64x96xf32>
      %cst = arith.constant dense<0.000000e+00> : vector<4x96xf32>
      %9 = tpu.matmul %7, %8, %cst {dimension_numbers = #tpu.dot_dimension_numbers<[1], [0], [0], [1], [0, 0, 1, 1], [], []>} : vector<4x64xf32>, vector<64x96xf32>, vector<4x96xf32> -> vector<4x96xf32>
      %10 = vector.extract_strided_slice %7 {offsets = [0, 0], sizes = [4, 32], strides = [1, 1]} : vector<4x64xf32> to vector<4x32xf32>
      %11 = vector.extract_strided_slice %7 {offsets = [0, 32], sizes = [4, 32], strides = [1, 1]} : vector<4x64xf32> to vector<4x32xf32>
      %12 = arith.addf %10, %11 : vector<4x32xf32>
      %13 = arith.index_cast %5 : i32 to index
      %c0_8 = arith.constant 0 : index
      %c0_9 = arith.constant 0 : index
      %14 = vector.load %arg1[%13, %c0_8, %c0_9] : memref<8x2x128xf32, #tpu.memory_space<vmem>>, vector<1x2x128xf32>
      %15 = vector.shape_cast %14 : vector<1x2x128xf32> to vector<2x128xf32>
      %16 = arith.index_cast %6 : i32 to index
      %c0_10 = arith.constant 0 : index
      %c0_11 = arith.constant 0 : index
      %17 = vector.load %arg2[%16, %c0_10, %c0_11] : memref<8x2x128xf32, #tpu.memory_space<vmem>>, vector<1x2x128xf32>
      %18 = vector.shape_cast %17 : vector<1x2x128xf32> to vector<2x128xf32>
      %19 = tpu.concatenate %15, %18 in 0 : vector<2x128xf32>, vector<2x128xf32> -> vector<4x128xf32>
      %20 = vector.extract_strided_slice %19 {offsets = [0, 0], sizes = [4, 32], strides = [1, 1]} : vector<4x128xf32> to vector<4x32xf32>
      %21 = vector.extract_strided_slice %9 {offsets = [0, 0], sizes = [4, 32], strides = [1, 1]} : vector<4x96xf32> to vector<4x32xf32>
      %22 = arith.addf %20, %21 : vector<4x32xf32>
      %23 = arith.negf %22 : vector<4x32xf32>
      %24 = math.exp %23 : vector<4x32xf32>
      %cst_12 = arith.constant 1.000000e+00 : f32
      %25 = vector.broadcast %cst_12 : f32 to vector<4x32xf32>
      %26 = arith.addf %25, %24 : vector<4x32xf32>
      %27 = arith.divf %25, %26 : vector<4x32xf32>
      %28 = vector.extract_strided_slice %19 {offsets = [0, 32], sizes = [4, 32], strides = [1, 1]} : vector<4x128xf32> to vector<4x32xf32>
      %29 = vector.extract_strided_slice %9 {offsets = [0, 32], sizes = [4, 32], strides = [1, 1]} : vector<4x96xf32> to vector<4x32xf32>
      %30 = arith.addf %28, %29 : vector<4x32xf32>
      %31 = arith.negf %30 : vector<4x32xf32>
      %32 = math.exp %31 : vector<4x32xf32>
      %cst_13 = arith.constant 1.000000e+00 : f32
      %33 = vector.broadcast %cst_13 : f32 to vector<4x32xf32>
      %34 = arith.addf %33, %32 : vector<4x32xf32>
      %35 = arith.divf %33, %34 : vector<4x32xf32>
      %36 = vector.extract_strided_slice %19 {offsets = [0, 64], sizes = [4, 32], strides = [1, 1]} : vector<4x128xf32> to vector<4x32xf32>
      %37 = vector.extract_strided_slice %9 {offsets = [0, 64], sizes = [4, 32], strides = [1, 1]} : vector<4x96xf32> to vector<4x32xf32>
      %c0_14 = arith.constant 0 : index
      %c0_15 = arith.constant 0 : index
      %38 = vector.load %arg4[%c0_14, %c0_15] : memref<4x32xf32, #tpu.memory_space<vmem>>, vector<4x32xf32>
      %39 = arith.addf %37, %38 : vector<4x32xf32>
      %40 = arith.mulf %27, %39 : vector<4x32xf32>
      %41 = arith.addf %36, %40 : vector<4x32xf32>
      %42 = math.tanh %41 : vector<4x32xf32>
      %cst_16 = arith.constant 1.000000e+00 : f32
      %43 = vector.broadcast %cst_16 : f32 to vector<4x32xf32>
      %44 = arith.subf %43, %35 : vector<4x32xf32>
      %45 = arith.mulf %44, %42 : vector<4x32xf32>
      %46 = arith.mulf %35, %12 : vector<4x32xf32>
      %47 = arith.addf %45, %46 : vector<4x32xf32>
      %48 = vector.extract_strided_slice %47 {offsets = [0, 0], sizes = [2, 32], strides = [1, 1]} : vector<4x32xf32> to vector<2x32xf32>
      %c0_17 = arith.constant 0 : index
      %c0_18 = arith.constant 0 : index
      %49 = vector.load %arg7[%c0_17, %c0_18] : memref<4x64xf32, #tpu.memory_space<vmem>>, vector<2x32xf32>
      tpu.vector_store %arg7[%c0_17, %c0_18], %48 {strides = array<i32>} : memref<4x64xf32, #tpu.memory_space<vmem>>, vector<2x32xf32>,
      %50 = vector.extract_strided_slice %47 {offsets = [0, 0], sizes = [2, 32], strides = [1, 1]} : vector<4x32xf32> to vector<2x32xf32>
      %51 = arith.truncf %50 : vector<2x32xf32> to vector<2x32xbf16>
      %52 = arith.index_cast %5 : i32 to index
      %c0_19 = arith.constant 0 : index
      %c0_20 = arith.constant 0 : index
      %53 = vector.load %arg5[%52, %c0_19, %c0_20] : memref<8x2x32xbf16, #tpu.memory_space<vmem>>, vector<1x2x32xbf16>
      %54 = vector.shape_cast %53 : vector<1x2x32xbf16> to vector<2x32xbf16>
      %55 = vector.shape_cast %51 : vector<2x32xbf16> to vector<1x2x32xbf16>
      tpu.vector_store %arg5[%52, %c0_19, %c0_20], %55 {strides = array<i32>} : memref<8x2x32xbf16, #tpu.memory_space<vmem>>, vector<1x2x32xbf16>,
      %56 = vector.extract_strided_slice %47 {offsets = [2, 0], sizes = [2, 32], strides = [1, 1]} : vector<4x32xf32> to vector<2x32xf32>
      %c2 = arith.constant 2 : index
      %c32 = arith.constant 32 : index
      %57 = vector.load %arg7[%c2, %c32] : memref<4x64xf32, #tpu.memory_space<vmem>>, vector<2x32xf32>
      tpu.vector_store %arg7[%c2, %c32], %56 {strides = array<i32>} : memref<4x64xf32, #tpu.memory_space<vmem>>, vector<2x32xf32>,
      %58 = vector.extract_strided_slice %47 {offsets = [2, 0], sizes = [2, 32], strides = [1, 1]} : vector<4x32xf32> to vector<2x32xf32>
      %59 = arith.truncf %58 : vector<2x32xf32> to vector<2x32xbf16>
      %60 = arith.index_cast %6 : i32 to index
      %c0_21 = arith.constant 0 : index
      %c0_22 = arith.constant 0 : index
      %61 = vector.load %arg6[%60, %c0_21, %c0_22] : memref<8x2x32xbf16, #tpu.memory_space<vmem>>, vector<1x2x32xbf16>
      %62 = vector.shape_cast %61 : vector<1x2x32xbf16> to vector<2x32xbf16>
      %63 = vector.shape_cast %59 : vector<2x32xbf16> to vector<1x2x32xbf16>
      tpu.vector_store %arg6[%60, %c0_21, %c0_22], %63 {strides = array<i32>} : memref<8x2x32xbf16, #tpu.memory_space<vmem>>, vector<1x2x32xbf16>,
    }
    %c8_i32_2 = arith.constant 8 : i32
    return
  }
  func.func @transform_0(%arg0: i32) -> (i32, i32, i32) {
    %c0_i32 = arith.constant 0 : i32
    %c0_i32_0 = arith.constant 0 : i32
    %c0_i32_1 = arith.constant 0 : i32
    return %arg0, %c0_i32, %c0_i32_0 : i32, i32, i32
  }
  func.func @transform_1(%arg0: i32) -> (i32, i32, i32) {
    %c0_i32 = arith.constant 0 : i32
    %0 = arith.subi %c0_i32, %arg0 : i32
    %c0_i32_0 = arith.constant 0 : i32
    %c0_i32_1 = arith.constant 0 : i32
    %c0_i32_2 = arith.constant 0 : i32
    return %0, %c0_i32_0, %c0_i32_1 : i32, i32, i32
  }
  func.func @transform_2(%arg0: i32) -> (i32, i32) {
    %c0_i32 = arith.constant 0 : i32
    %c0_i32_0 = arith.constant 0 : i32
    %c0_i32_1 = arith.constant 0 : i32
    return %c0_i32, %c0_i32_0 : i32, i32
  }
  func.func @transform_3(%arg0: i32) -> (i32, i32) {
    %c0_i32 = arith.constant 0 : i32
    %c0_i32_0 = arith.constant 0 : i32
    %c0_i32_1 = arith.constant 0 : i32
    return %c0_i32, %c0_i32_0 : i32, i32
  }
  func.func @transform_4(%arg0: i32) -> (i32, i32, i32) {
    %c0_i32 = arith.constant 0 : i32
    %c0_i32_0 = arith.constant 0 : i32
    %c0_i32_1 = arith.constant 0 : i32
    return %arg0, %c0_i32, %c0_i32_0 : i32, i32, i32
  }
  func.func @transform_5(%arg0: i32) -> (i32, i32, i32) {
    %c0_i32 = arith.constant 0 : i32
    %0 = arith.subi %c0_i32, %arg0 : i32
    %c0_i32_0 = arith.constant 0 : i32
    %c0_i32_1 = arith.constant 0 : i32
    %c0_i32_2 = arith.constant 0 : i32
    return %0, %c0_i32_0, %c0_i32_1 : i32, i32, i32
  }
}

module attributes {stable_mosaic.version = 11 : i64} {
  func.func @kernel(%arg0: i32, %arg1: memref<16x32xf32, #tpu.memory_space<vmem>>, %arg2: memref<32x128xbf16, #tpu.memory_space<vmem>>, %arg3: memref<32x128xbf16, #tpu.memory_space<vmem>>, %arg4: memref<1x128xf32, #tpu.memory_space<vmem>>, %arg5: memref<1x128xf32, #tpu.memory_space<vmem>>, %arg6: memref<16x128xf32, #tpu.memory_space<vmem>>, %arg7: memref<16x128xf32, #tpu.memory_space<vmem>>) attributes {dimension_semantics = [#tpu.dimension_semantics<parallel>], iteration_bounds = array<i64: 1>, scalar_prefetch = 0 : i64, scratch_operands = 0 : i64, tpu.core_type = #tpu.core_type<tc>, window_params = [{transform_indices = @transform_0, window_bounds = array<i64: 16, 32>}, {pipeline_mode = #tpu.pipeline_mode<synchronous>, transform_indices = @transform_1, window_bounds = array<i64: 32, 128>}, {pipeline_mode = #tpu.pipeline_mode<synchronous>, transform_indices = @transform_2, window_bounds = array<i64: 32, 128>}, {pipeline_mode = #tpu.pipeline_mode<synchronous>, transform_indices = @transform_3, window_bounds = array<i64: 1, 128>}, {pipeline_mode = #tpu.pipeline_mode<synchronous>, transform_indices = @transform_4, window_bounds = array<i64: 1, 128>}, {transform_indices = @transform_5, window_bounds = array<i64: 16, 128>}, {transform_indices = @transform_6, window_bounds = array<i64: 16, 128>}]} {
    %c0 = arith.constant 0 : index
    %c0_0 = arith.constant 0 : index
    %0 = vector.load %arg1[%c0, %c0_0] : memref<16x32xf32, #tpu.memory_space<vmem>>, vector<16x32xf32>
    %1 = arith.truncf %0 : vector<16x32xf32> to vector<16x32xbf16>
    %c0_1 = arith.constant 0 : index
    %c0_2 = arith.constant 0 : index
    %2 = vector.load %arg2[%c0_1, %c0_2] : memref<32x128xbf16, #tpu.memory_space<vmem>>, vector<32x128xbf16>
    %cst = arith.constant dense<0.000000e+00> : vector<16x128xf32>
    %3 = tpu.matmul %1, %2, %cst {dimension_numbers = #tpu.dot_dimension_numbers<[1], [0], [0], [1], [0, 0, 1, 1], [], []>} : vector<16x32xbf16>, vector<32x128xbf16>, vector<16x128xf32> -> vector<16x128xf32>
    %c0_3 = arith.constant 0 : index
    %c0_4 = arith.constant 0 : index
    %4 = vector.load %arg4[%c0_3, %c0_4] : memref<1x128xf32, #tpu.memory_space<vmem>>, vector<1x128xf32>
    %5 = vector.broadcast %4 : vector<1x128xf32> to vector<16x128xf32>
    %6 = arith.addf %3, %5 : vector<16x128xf32>
    %c0_5 = arith.constant 0 : index
    %c0_6 = arith.constant 0 : index
    %7 = vector.load %arg6[%c0_5, %c0_6] : memref<16x128xf32, #tpu.memory_space<vmem>>, vector<16x128xf32>
    tpu.vector_store %arg6[%c0_5, %c0_6], %6 {strides = array<i32>} : memref<16x128xf32, #tpu.memory_space<vmem>>, vector<16x128xf32>,
    %c0_7 = arith.constant 0 : index
    %c0_8 = arith.constant 0 : index
    %8 = vector.load %arg3[%c0_7, %c0_8] : memref<32x128xbf16, #tpu.memory_space<vmem>>, vector<32x128xbf16>
    %cst_9 = arith.constant dense<0.000000e+00> : vector<16x128xf32>
    %9 = tpu.matmul %1, %8, %cst_9 {dimension_numbers = #tpu.dot_dimension_numbers<[1], [0], [0], [1], [0, 0, 1, 1], [], []>} : vector<16x32xbf16>, vector<32x128xbf16>, vector<16x128xf32> -> vector<16x128xf32>
    %c0_10 = arith.constant 0 : index
    %c0_11 = arith.constant 0 : index
    %10 = vector.load %arg5[%c0_10, %c0_11] : memref<1x128xf32, #tpu.memory_space<vmem>>, vector<1x128xf32>
    %11 = vector.broadcast %10 : vector<1x128xf32> to vector<16x128xf32>
    %12 = arith.addf %9, %11 : vector<16x128xf32>
    %c0_12 = arith.constant 0 : index
    %c0_13 = arith.constant 0 : index
    %13 = vector.load %arg7[%c0_12, %c0_13] : memref<16x128xf32, #tpu.memory_space<vmem>>, vector<16x128xf32>
    tpu.vector_store %arg7[%c0_12, %c0_13], %12 {strides = array<i32>} : memref<16x128xf32, #tpu.memory_space<vmem>>, vector<16x128xf32>,
    return
  }
  func.func @transform_0(%arg0: i32) -> (i32, i32) {
    %c0_i32 = arith.constant 0 : i32
    %c0_i32_0 = arith.constant 0 : i32
    return %arg0, %c0_i32 : i32, i32
  }
  func.func @transform_1(%arg0: i32) -> (i32, i32) {
    %c0_i32 = arith.constant 0 : i32
    %c0_i32_0 = arith.constant 0 : i32
    %c0_i32_1 = arith.constant 0 : i32
    return %c0_i32, %c0_i32_0 : i32, i32
  }
  func.func @transform_2(%arg0: i32) -> (i32, i32) {
    %c0_i32 = arith.constant 0 : i32
    %c0_i32_0 = arith.constant 0 : i32
    %c0_i32_1 = arith.constant 0 : i32
    return %c0_i32, %c0_i32_0 : i32, i32
  }
  func.func @transform_3(%arg0: i32) -> (i32, i32) {
    %c0_i32 = arith.constant 0 : i32
    %c0_i32_0 = arith.constant 0 : i32
    %c0_i32_1 = arith.constant 0 : i32
    return %c0_i32, %c0_i32_0 : i32, i32
  }
  func.func @transform_4(%arg0: i32) -> (i32, i32) {
    %c0_i32 = arith.constant 0 : i32
    %c0_i32_0 = arith.constant 0 : i32
    %c0_i32_1 = arith.constant 0 : i32
    return %c0_i32, %c0_i32_0 : i32, i32
  }
  func.func @transform_5(%arg0: i32) -> (i32, i32) {
    %c0_i32 = arith.constant 0 : i32
    %c0_i32_0 = arith.constant 0 : i32
    return %arg0, %c0_i32 : i32, i32
  }
  func.func @transform_6(%arg0: i32) -> (i32, i32) {
    %c0_i32 = arith.constant 0 : i32
    %c0_i32_0 = arith.constant 0 : i32
    return %arg0, %c0_i32 : i32, i32
  }
}

module attributes {stable_mosaic.version = 11 : i64} {
  func.func @kernel(%arg0: i32, %arg1: memref<16x32xbf16, #tpu.memory_space<vmem>>, %arg2: memref<16x32xbf16, #tpu.memory_space<vmem>>, %arg3: memref<32x128xbf16, #tpu.memory_space<vmem>>, %arg4: memref<32x128xbf16, #tpu.memory_space<vmem>>, %arg5: memref<32x128xbf16, #tpu.memory_space<vmem>>, %arg6: memref<32x128xbf16, #tpu.memory_space<vmem>>, %arg7: memref<1x128xf32, #tpu.memory_space<vmem>>, %arg8: memref<1x128xf32, #tpu.memory_space<vmem>>, %arg9: memref<16x128xf32, #tpu.memory_space<vmem>>, %arg10: memref<16x128xf32, #tpu.memory_space<vmem>>) attributes {dimension_semantics = [#tpu.dimension_semantics<parallel>], iteration_bounds = array<i64: 1>, scalar_prefetch = 0 : i64, scratch_operands = 0 : i64, tpu.core_type = #tpu.core_type<tc>, window_params = [{transform_indices = @transform_0, window_bounds = array<i64: 16, 32>}, {transform_indices = @transform_1, window_bounds = array<i64: 16, 32>}, {pipeline_mode = #tpu.pipeline_mode<synchronous>, transform_indices = @transform_2, window_bounds = array<i64: 32, 128>}, {pipeline_mode = #tpu.pipeline_mode<synchronous>, transform_indices = @transform_3, window_bounds = array<i64: 32, 128>}, {pipeline_mode = #tpu.pipeline_mode<synchronous>, transform_indices = @transform_4, window_bounds = array<i64: 32, 128>}, {pipeline_mode = #tpu.pipeline_mode<synchronous>, transform_indices = @transform_5, window_bounds = array<i64: 32, 128>}, {pipeline_mode = #tpu.pipeline_mode<synchronous>, transform_indices = @transform_6, window_bounds = array<i64: 1, 128>}, {pipeline_mode = #tpu.pipeline_mode<synchronous>, transform_indices = @transform_7, window_bounds = array<i64: 1, 128>}, {transform_indices = @transform_8, window_bounds = array<i64: 16, 128>}, {transform_indices = @transform_9, window_bounds = array<i64: 16, 128>}]} {
    %c0 = arith.constant 0 : index
    %c0_0 = arith.constant 0 : index
    %0 = vector.load %arg1[%c0, %c0_0] : memref<16x32xbf16, #tpu.memory_space<vmem>>, vector<16x32xbf16>
    %c0_1 = arith.constant 0 : index
    %c0_2 = arith.constant 0 : index
    %1 = vector.load %arg2[%c0_1, %c0_2] : memref<16x32xbf16, #tpu.memory_space<vmem>>, vector<16x32xbf16>
    %c0_3 = arith.constant 0 : index
    %c0_4 = arith.constant 0 : index
    %2 = vector.load %arg3[%c0_3, %c0_4] : memref<32x128xbf16, #tpu.memory_space<vmem>>, vector<32x128xbf16>
    %cst = arith.constant dense<0.000000e+00> : vector<16x128xf32>
    %3 = tpu.matmul %0, %2, %cst {dimension_numbers = #tpu.dot_dimension_numbers<[1], [0], [0], [1], [0, 0, 1, 1], [], []>} : vector<16x32xbf16>, vector<32x128xbf16>, vector<16x128xf32> -> vector<16x128xf32>
    %c0_5 = arith.constant 0 : index
    %c0_6 = arith.constant 0 : index
    %4 = vector.load %arg4[%c0_5, %c0_6] : memref<32x128xbf16, #tpu.memory_space<vmem>>, vector<32x128xbf16>
    %cst_7 = arith.constant dense<0.000000e+00> : vector<16x128xf32>
    %5 = tpu.matmul %1, %4, %cst_7 {dimension_numbers = #tpu.dot_dimension_numbers<[1], [0], [0], [1], [0, 0, 1, 1], [], []>} : vector<16x32xbf16>, vector<32x128xbf16>, vector<16x128xf32> -> vector<16x128xf32>
    %6 = arith.addf %3, %5 : vector<16x128xf32>
    %c0_8 = arith.constant 0 : index
    %c0_9 = arith.constant 0 : index
    %7 = vector.load %arg7[%c0_8, %c0_9] : memref<1x128xf32, #tpu.memory_space<vmem>>, vector<1x128xf32>
    %8 = vector.broadcast %7 : vector<1x128xf32> to vector<16x128xf32>
    %9 = arith.addf %6, %8 : vector<16x128xf32>
    %c0_10 = arith.constant 0 : index
    %c0_11 = arith.constant 0 : index
    %10 = vector.load %arg9[%c0_10, %c0_11] : memref<16x128xf32, #tpu.memory_space<vmem>>, vector<16x128xf32>
    tpu.vector_store %arg9[%c0_10, %c0_11], %9 {strides = array<i32>} : memref<16x128xf32, #tpu.memory_space<vmem>>, vector<16x128xf32>,
    %c0_12 = arith.constant 0 : index
    %c0_13 = arith.constant 0 : index
    %11 = vector.load %arg5[%c0_12, %c0_13] : memref<32x128xbf16, #tpu.memory_space<vmem>>, vector<32x128xbf16>
    %cst_14 = arith.constant dense<0.000000e+00> : vector<16x128xf32>
    %12 = tpu.matmul %0, %11, %cst_14 {dimension_numbers = #tpu.dot_dimension_numbers<[1], [0], [0], [1], [0, 0, 1, 1], [], []>} : vector<16x32xbf16>, vector<32x128xbf16>, vector<16x128xf32> -> vector<16x128xf32>
    %c0_15 = arith.constant 0 : index
    %c0_16 = arith.constant 0 : index
    %13 = vector.load %arg6[%c0_15, %c0_16] : memref<32x128xbf16, #tpu.memory_space<vmem>>, vector<32x128xbf16>
    %cst_17 = arith.constant dense<0.000000e+00> : vector<16x128xf32>
    %14 = tpu.matmul %1, %13, %cst_17 {dimension_numbers = #tpu.dot_dimension_numbers<[1], [0], [0], [1], [0, 0, 1, 1], [], []>} : vector<16x32xbf16>, vector<32x128xbf16>, vector<16x128xf32> -> vector<16x128xf32>
    %15 = arith.addf %12, %14 : vector<16x128xf32>
    %c0_18 = arith.constant 0 : index
    %c0_19 = arith.constant 0 : index
    %16 = vector.load %arg8[%c0_18, %c0_19] : memref<1x128xf32, #tpu.memory_space<vmem>>, vector<1x128xf32>
    %17 = vector.broadcast %16 : vector<1x128xf32> to vector<16x128xf32>
    %18 = arith.addf %15, %17 : vector<16x128xf32>
    %c0_20 = arith.constant 0 : index
    %c0_21 = arith.constant 0 : index
    %19 = vector.load %arg10[%c0_20, %c0_21] : memref<16x128xf32, #tpu.memory_space<vmem>>, vector<16x128xf32>
    tpu.vector_store %arg10[%c0_20, %c0_21], %18 {strides = array<i32>} : memref<16x128xf32, #tpu.memory_space<vmem>>, vector<16x128xf32>,
    return
  }
  func.func @transform_0(%arg0: i32) -> (i32, i32) {
    %c0_i32 = arith.constant 0 : i32
    %c0_i32_0 = arith.constant 0 : i32
    return %arg0, %c0_i32 : i32, i32
  }
  func.func @transform_1(%arg0: i32) -> (i32, i32) {
    %c0_i32 = arith.constant 0 : i32
    %c0_i32_0 = arith.constant 0 : i32
    return %arg0, %c0_i32 : i32, i32
  }
  func.func @transform_2(%arg0: i32) -> (i32, i32) {
    %c0_i32 = arith.constant 0 : i32
    %c0_i32_0 = arith.constant 0 : i32
    %c0_i32_1 = arith.constant 0 : i32
    return %c0_i32, %c0_i32_0 : i32, i32
  }
  func.func @transform_3(%arg0: i32) -> (i32, i32) {
    %c0_i32 = arith.constant 0 : i32
    %c0_i32_0 = arith.constant 0 : i32
    %c0_i32_1 = arith.constant 0 : i32
    return %c0_i32, %c0_i32_0 : i32, i32
  }
  func.func @transform_4(%arg0: i32) -> (i32, i32) {
    %c0_i32 = arith.constant 0 : i32
    %c0_i32_0 = arith.constant 0 : i32
    %c0_i32_1 = arith.constant 0 : i32
    return %c0_i32, %c0_i32_0 : i32, i32
  }
  func.func @transform_5(%arg0: i32) -> (i32, i32) {
    %c0_i32 = arith.constant 0 : i32
    %c0_i32_0 = arith.constant 0 : i32
    %c0_i32_1 = arith.constant 0 : i32
    return %c0_i32, %c0_i32_0 : i32, i32
  }
  func.func @transform_6(%arg0: i32) -> (i32, i32) {
    %c0_i32 = arith.constant 0 : i32
    %c0_i32_0 = arith.constant 0 : i32
    %c0_i32_1 = arith.constant 0 : i32
    return %c0_i32, %c0_i32_0 : i32, i32
  }
  func.func @transform_7(%arg0: i32) -> (i32, i32) {
    %c0_i32 = arith.constant 0 : i32
    %c0_i32_0 = arith.constant 0 : i32
    %c0_i32_1 = arith.constant 0 : i32
    return %c0_i32, %c0_i32_0 : i32, i32
  }
  func.func @transform_8(%arg0: i32) -> (i32, i32) {
    %c0_i32 = arith.constant 0 : i32
    %c0_i32_0 = arith.constant 0 : i32
    return %arg0, %c0_i32 : i32, i32
  }
  func.func @transform_9(%arg0: i32) -> (i32, i32) {
    %c0_i32 = arith.constant 0 : i32
    %c0_i32_0 = arith.constant 0 : i32
    return %arg0, %c0_i32 : i32, i32
  }
}

module attributes {stable_mosaic.version = 11 : i64} {
  func.func @kernel(%arg0: i32, %arg1: memref<16x32xbf16, #tpu.memory_space<vmem>>, %arg2: memref<16x32xbf16, #tpu.memory_space<vmem>>, %arg3: memref<32x128xbf16, #tpu.memory_space<vmem>>, %arg4: memref<32x128xbf16, #tpu.memory_space<vmem>>, %arg5: memref<1x128xf32, #tpu.memory_space<vmem>>, %arg6: memref<16x128xf32, #tpu.memory_space<vmem>>) attributes {dimension_semantics = [#tpu.dimension_semantics<parallel>], iteration_bounds = array<i64: 1>, scalar_prefetch = 0 : i64, scratch_operands = 0 : i64, tpu.core_type = #tpu.core_type<tc>, window_params = [{transform_indices = @transform_0, window_bounds = array<i64: 16, 32>}, {transform_indices = @transform_1, window_bounds = array<i64: 16, 32>}, {pipeline_mode = #tpu.pipeline_mode<synchronous>, transform_indices = @transform_2, window_bounds = array<i64: 32, 128>}, {pipeline_mode = #tpu.pipeline_mode<synchronous>, transform_indices = @transform_3, window_bounds = array<i64: 32, 128>}, {pipeline_mode = #tpu.pipeline_mode<synchronous>, transform_indices = @transform_4, window_bounds = array<i64: 1, 128>}, {transform_indices = @transform_5, window_bounds = array<i64: 16, 128>}]} {
    %c0 = arith.constant 0 : index
    %c0_0 = arith.constant 0 : index
    %0 = vector.load %arg1[%c0, %c0_0] : memref<16x32xbf16, #tpu.memory_space<vmem>>, vector<16x32xbf16>
    %c0_1 = arith.constant 0 : index
    %c0_2 = arith.constant 0 : index
    %1 = vector.load %arg2[%c0_1, %c0_2] : memref<16x32xbf16, #tpu.memory_space<vmem>>, vector<16x32xbf16>
    %c0_3 = arith.constant 0 : index
    %c0_4 = arith.constant 0 : index
    %2 = vector.load %arg3[%c0_3, %c0_4] : memref<32x128xbf16, #tpu.memory_space<vmem>>, vector<32x128xbf16>
    %cst = arith.constant dense<0.000000e+00> : vector<16x128xf32>
    %3 = tpu.matmul %0, %2, %cst {dimension_numbers = #tpu.dot_dimension_numbers<[1], [0], [0], [1], [0, 0, 1, 1], [], []>} : vector<16x32xbf16>, vector<32x128xbf16>, vector<16x128xf32> -> vector<16x128xf32>
    %c0_5 = arith.constant 0 : index
    %c0_6 = arith.constant 0 : index
    %4 = vector.load %arg4[%c0_5, %c0_6] : memref<32x128xbf16, #tpu.memory_space<vmem>>, vector<32x128xbf16>
    %cst_7 = arith.constant dense<0.000000e+00> : vector<16x128xf32>
    %5 = tpu.matmul %1, %4, %cst_7 {dimension_numbers = #tpu.dot_dimension_numbers<[1], [0], [0], [1], [0, 0, 1, 1], [], []>} : vector<16x32xbf16>, vector<32x128xbf16>, vector<16x128xf32> -> vector<16x128xf32>
    %6 = arith.addf %3, %5 : vector<16x128xf32>
    %c0_8 = arith.constant 0 : index
    %c0_9 = arith.constant 0 : index
    %7 = vector.load %arg5[%c0_8, %c0_9] : memref<1x128xf32, #tpu.memory_space<vmem>>, vector<1x128xf32>
    %8 = vector.broadcast %7 : vector<1x128xf32> to vector<16x128xf32>
    %9 = arith.addf %6, %8 : vector<16x128xf32>
    %c0_10 = arith.constant 0 : index
    %c0_11 = arith.constant 0 : index
    %10 = vector.load %arg6[%c0_10, %c0_11] : memref<16x128xf32, #tpu.memory_space<vmem>>, vector<16x128xf32>
    tpu.vector_store %arg6[%c0_10, %c0_11], %9 {strides = array<i32>} : memref<16x128xf32, #tpu.memory_space<vmem>>, vector<16x128xf32>,
    return
  }
  func.func @transform_0(%arg0: i32) -> (i32, i32) {
    %c0_i32 = arith.constant 0 : i32
    %c0_i32_0 = arith.constant 0 : i32
    return %arg0, %c0_i32 : i32, i32
  }
  func.func @transform_1(%arg0: i32) -> (i32, i32) {
    %c0_i32 = arith.constant 0 : i32
    %c0_i32_0 = arith.constant 0 : i32
    return %arg0, %c0_i32 : i32, i32
  }
  func.func @transform_2(%arg0: i32) -> (i32, i32) {
    %c0_i32 = arith.constant 0 : i32
    %c0_i32_0 = arith.constant 0 : i32
    %c0_i32_1 = arith.constant 0 : i32
    return %c0_i32, %c0_i32_0 : i32, i32
  }
  func.func @transform_3(%arg0: i32) -> (i32, i32) {
    %c0_i32 = arith.constant 0 : i32
    %c0_i32_0 = arith.constant 0 : i32
    %c0_i32_1 = arith.constant 0 : i32
    return %c0_i32, %c0_i32_0 : i32, i32
  }
  func.func @transform_4(%arg0: i32) -> (i32, i32) {
    %c0_i32 = arith.constant 0 : i32
    %c0_i32_0 = arith.constant 0 : i32
    %c0_i32_1 = arith.constant 0 : i32
    return %c0_i32, %c0_i32_0 : i32, i32
  }
  func.func @transform_5(%arg0: i32) -> (i32, i32) {
    %c0_i32 = arith.constant 0 : i32
    %c0_i32_0 = arith.constant 0 : i32
    return %arg0, %c0_i32 : i32, i32
  }
}

module attributes {stable_mosaic.version = 11 : i64} {
  func.func @kernel(%arg0: i32, %arg1: memref<16x32xf32, #tpu.memory_space<vmem>>, %arg2: memref<16x32xf32, #tpu.memory_space<vmem>>, %arg3: memref<16x32xf32, #tpu.memory_space<vmem>>, %arg4: memref<32x128xbf16, #tpu.memory_space<vmem>>, %arg5: memref<32x128xbf16, #tpu.memory_space<vmem>>, %arg6: memref<32x128xbf16, #tpu.memory_space<vmem>>, %arg7: memref<1x128xf32, #tpu.memory_space<vmem>>, %arg8: memref<16x128xf32, #tpu.memory_space<vmem>>) attributes {dimension_semantics = [#tpu.dimension_semantics<parallel>], iteration_bounds = array<i64: 1>, scalar_prefetch = 0 : i64, scratch_operands = 0 : i64, tpu.core_type = #tpu.core_type<tc>, window_params = [{transform_indices = @transform_0, window_bounds = array<i64: 16, 32>}, {transform_indices = @transform_1, window_bounds = array<i64: 16, 32>}, {transform_indices = @transform_2, window_bounds = array<i64: 16, 32>}, {pipeline_mode = #tpu.pipeline_mode<synchronous>, transform_indices = @transform_3, window_bounds = array<i64: 32, 128>}, {pipeline_mode = #tpu.pipeline_mode<synchronous>, transform_indices = @transform_4, window_bounds = array<i64: 32, 128>}, {pipeline_mode = #tpu.pipeline_mode<synchronous>, transform_indices = @transform_5, window_bounds = array<i64: 32, 128>}, {pipeline_mode = #tpu.pipeline_mode<synchronous>, transform_indices = @transform_6, window_bounds = array<i64: 1, 128>}, {transform_indices = @transform_7, window_bounds = array<i64: 16, 128>}]} {
    %c0 = arith.constant 0 : index
    %c0_0 = arith.constant 0 : index
    %0 = vector.load %arg1[%c0, %c0_0] : memref<16x32xf32, #tpu.memory_space<vmem>>, vector<16x32xf32>
    %1 = arith.truncf %0 : vector<16x32xf32> to vector<16x32xbf16>
    %c0_1 = arith.constant 0 : index
    %c0_2 = arith.constant 0 : index
    %2 = vector.load %arg2[%c0_1, %c0_2] : memref<16x32xf32, #tpu.memory_space<vmem>>, vector<16x32xf32>
    %3 = arith.truncf %2 : vector<16x32xf32> to vector<16x32xbf16>
    %c0_3 = arith.constant 0 : index
    %c0_4 = arith.constant 0 : index
    %4 = vector.load %arg3[%c0_3, %c0_4] : memref<16x32xf32, #tpu.memory_space<vmem>>, vector<16x32xf32>
    %5 = arith.truncf %4 : vector<16x32xf32> to vector<16x32xbf16>
    %c0_5 = arith.constant 0 : index
    %c0_6 = arith.constant 0 : index
    %6 = vector.load %arg4[%c0_5, %c0_6] : memref<32x128xbf16, #tpu.memory_space<vmem>>, vector<32x128xbf16>
    %cst = arith.constant dense<0.000000e+00> : vector<16x128xf32>
    %7 = tpu.matmul %1, %6, %cst {dimension_numbers = #tpu.dot_dimension_numbers<[1], [0], [0], [1], [0, 0, 1, 1], [], []>} : vector<16x32xbf16>, vector<32x128xbf16>, vector<16x128xf32> -> vector<16x128xf32>
    %c0_7 = arith.constant 0 : index
    %c0_8 = arith.constant 0 : index
    %8 = vector.load %arg5[%c0_7, %c0_8] : memref<32x128xbf16, #tpu.memory_space<vmem>>, vector<32x128xbf16>
    %cst_9 = arith.constant dense<0.000000e+00> : vector<16x128xf32>
    %9 = tpu.matmul %3, %8, %cst_9 {dimension_numbers = #tpu.dot_dimension_numbers<[1], [0], [0], [1], [0, 0, 1, 1], [], []>} : vector<16x32xbf16>, vector<32x128xbf16>, vector<16x128xf32> -> vector<16x128xf32>
    %10 = arith.addf %7, %9 : vector<16x128xf32>
    %c0_10 = arith.constant 0 : index
    %c0_11 = arith.constant 0 : index
    %11 = vector.load %arg6[%c0_10, %c0_11] : memref<32x128xbf16, #tpu.memory_space<vmem>>, vector<32x128xbf16>
    %cst_12 = arith.constant dense<0.000000e+00> : vector<16x128xf32>
    %12 = tpu.matmul %5, %11, %cst_12 {dimension_numbers = #tpu.dot_dimension_numbers<[1], [0], [0], [1], [0, 0, 1, 1], [], []>} : vector<16x32xbf16>, vector<32x128xbf16>, vector<16x128xf32> -> vector<16x128xf32>
    %13 = arith.addf %10, %12 : vector<16x128xf32>
    %c0_13 = arith.constant 0 : index
    %c0_14 = arith.constant 0 : index
    %14 = vector.load %arg7[%c0_13, %c0_14] : memref<1x128xf32, #tpu.memory_space<vmem>>, vector<1x128xf32>
    %15 = vector.broadcast %14 : vector<1x128xf32> to vector<16x128xf32>
    %16 = arith.addf %13, %15 : vector<16x128xf32>
    %c0_15 = arith.constant 0 : index
    %c0_16 = arith.constant 0 : index
    %17 = vector.load %arg8[%c0_15, %c0_16] : memref<16x128xf32, #tpu.memory_space<vmem>>, vector<16x128xf32>
    tpu.vector_store %arg8[%c0_15, %c0_16], %16 {strides = array<i32>} : memref<16x128xf32, #tpu.memory_space<vmem>>, vector<16x128xf32>,
    return
  }
  func.func @transform_0(%arg0: i32) -> (i32, i32) {
    %c0_i32 = arith.constant 0 : i32
    %c0_i32_0 = arith.constant 0 : i32
    return %arg0, %c0_i32 : i32, i32
  }
  func.func @transform_1(%arg0: i32) -> (i32, i32) {
    %c0_i32 = arith.constant 0 : i32
    %c0_i32_0 = arith.constant 0 : i32
    return %arg0, %c0_i32 : i32, i32
  }
  func.func @transform_2(%arg0: i32) -> (i32, i32) {
    %c0_i32 = arith.constant 0 : i32
    %c0_i32_0 = arith.constant 0 : i32
    return %arg0, %c0_i32 : i32, i32
  }
  func.func @transform_3(%arg0: i32) -> (i32, i32) {
    %c0_i32 = arith.constant 0 : i32
    %c0_i32_0 = arith.constant 0 : i32
    %c0_i32_1 = arith.constant 0 : i32
    return %c0_i32, %c0_i32_0 : i32, i32
  }
  func.func @transform_4(%arg0: i32) -> (i32, i32) {
    %c0_i32 = arith.constant 0 : i32
    %c0_i32_0 = arith.constant 0 : i32
    %c0_i32_1 = arith.constant 0 : i32
    return %c0_i32, %c0_i32_0 : i32, i32
  }
  func.func @transform_5(%arg0: i32) -> (i32, i32) {
    %c0_i32 = arith.constant 0 : i32
    %c0_i32_0 = arith.constant 0 : i32
    %c0_i32_1 = arith.constant 0 : i32
    return %c0_i32, %c0_i32_0 : i32, i32
  }
  func.func @transform_6(%arg0: i32) -> (i32, i32) {
    %c0_i32 = arith.constant 0 : i32
    %c0_i32_0 = arith.constant 0 : i32
    %c0_i32_1 = arith.constant 0 : i32
    return %c0_i32, %c0_i32_0 : i32, i32
  }
  func.func @transform_7(%arg0: i32) -> (i32, i32) {
    %c0_i32 = arith.constant 0 : i32
    %c0_i32_0 = arith.constant 0 : i32
    return %arg0, %c0_i32 : i32, i32
  }
}

</mosaic_0001>

<llo_original>
// kernel: ctc_top_b_forward.8
$region0: #{ctc_top_b_forward.8}
  #allocation0 [shape = 'u32[]', space=smem, size = 0x4, offset = 0x4, fixed_abs, tag = 'smem constant byte address 0x4 - core index']
  #allocation1 [shape = 'u32[144,128]{1,0:T(1,128)}', space=vmem, size = 0x12000, scoped, tag = 'internal scratch']
  %s0 = inlined_call_operand.vmem [shape: bf16[16,32], index: 0, kind: input, shape index: {}]
  %s1 = inlined_call_operand.vmem [shape: bf16[16,32], index: 1, kind: input, shape index: {}]
  %s2 = inlined_call_operand.vmem [shape: bf16[32,128], index: 2, kind: input, shape index: {}]
  %s3 = inlined_call_operand.vmem [shape: bf16[32,128], index: 3, kind: input, shape index: {}]
  %s4 = inlined_call_operand.vmem [shape: bf16[32,128], index: 4, kind: input, shape index: {}]
  %s5 = inlined_call_operand.vmem [shape: bf16[32,128], index: 5, kind: input, shape index: {}]
  %s6 = inlined_call_operand.vmem [shape: f32[1,128], index: 6, kind: input, shape index: {}]
  %s7 = inlined_call_operand.vmem [shape: f32[1,128], index: 7, kind: input, shape index: {}]
  %s8 = inlined_call_operand.vmem [shape: f32[16,128], index: 8, kind: output, shape index: {0}]
  %s9 = inlined_call_operand.vmem [shape: f32[16,128], index: 9, kind: output, shape index: {1}]
  %10 = xla_tuple %s8, %s9
  %s11 = sld [smem:[#allocation0]]
  $region50: #{ctc_top_b_forward.8} parent=0
    _
  %s13 = ssub.s32 1, %s11
  %s14 = scalar_select 0, %s13, %s11
  // Predicated region
  $region2: #{ctc_top_b_forward.8} parent=0 // pred_check
    _
  $region3: #{ctc_top_b_forward.8} parent=0 // pred_check_branch
    %16 = sbr.rel (0) target = $region5
  $region4: #{ctc_top_b_forward.8} parent=0 // pred_region
    _
  $region5: #{ctc_top_b_forward.8} parent=0 // pred_fallthru
    _
  // Predicated region
  $region6: #{ctc_top_b_forward.8} parent=0 // pred_check
    _
  $region7: #{ctc_top_b_forward.8} parent=0 // pred_check_branch
    %18 = sbr.rel (0) target = $region9
  $region8: #{ctc_top_b_forward.8} parent=0 // pred_region
    _
  $region9: #{ctc_top_b_forward.8} parent=0 // pred_fallthru
    _
  // Predicated region
  $region10: #{ctc_top_b_forward.8} parent=0 // pred_check
    _
  $region11: #{ctc_top_b_forward.8} parent=0 // pred_check_branch
    %20 = sbr.rel (0) target = $region13
  $region12: #{ctc_top_b_forward.8} parent=0 // pred_region
    _
  $region13: #{ctc_top_b_forward.8} parent=0 // pred_fallthru
    _
  // Predicated region
  $region14: #{ctc_top_b_forward.8} parent=0 // pred_check
    _
  $region15: #{ctc_top_b_forward.8} parent=0 // pred_check_branch
    %22 = sbr.rel (0) target = $region17
  $region16: #{ctc_top_b_forward.8} parent=0 // pred_region
    _
  $region17: #{ctc_top_b_forward.8} parent=0 // pred_fallthru
    _
  // Predicated region
  $region18: #{ctc_top_b_forward.8} parent=0 // pred_check
    _
  $region19: #{ctc_top_b_forward.8} parent=0 // pred_check_branch
    %24 = sbr.rel (0) target = $region21
  $region20: #{ctc_top_b_forward.8} parent=0 // pred_region
    _
  $region21: #{ctc_top_b_forward.8} parent=0 // pred_fallthru
    _
  // Predicated region
  $region22: #{ctc_top_b_forward.8} parent=0 // pred_check
    _
  $region23: #{ctc_top_b_forward.8} parent=0 // pred_check_branch
    %26 = sbr.rel (0) target = $region25
  $region24: #{ctc_top_b_forward.8} parent=0 // pred_region
    _
  $region25: #{ctc_top_b_forward.8} parent=0 // pred_fallthru
    _
  // Predicated region
  $region26: #{ctc_top_b_forward.8} parent=0 // pred_check
    _
  $region27: #{ctc_top_b_forward.8} parent=0 // pred_check_branch
    %28 = sbr.rel (0) target = $region29
  $region28: #{ctc_top_b_forward.8} parent=0 // pred_region
    _
  $region29: #{ctc_top_b_forward.8} parent=0 // pred_fallthru
    _
  // Predicated region
  $region30: #{ctc_top_b_forward.8} parent=0 // pred_check
    _
  $region31: #{ctc_top_b_forward.8} parent=0 // pred_check_branch
    %30 = sbr.rel (0) target = $region33
  $region32: #{ctc_top_b_forward.8} parent=0 // pred_region
    _
  $region33: #{ctc_top_b_forward.8} parent=0 // pred_fallthru
    _
  %v32 = vld [vmem:[%s0] sm:$0xf]
  %v33 = vld [vmem:[%s0 + $0x4] sm:$0xf]
  %v34 = vld [vmem:[%s1] sm:$0xf]
  %v35 = vld [vmem:[%s1 + $0x4] sm:$0xf]
  %v36 = vld [vmem:[%s2] sm:$0xf]
  %v37 = vld [vmem:[%s2 + $0x4] sm:$0xf]
  %v38 = vld [vmem:[%s2 + $0x8] sm:$0xf]
  %v39 = vld [vmem:[%s2 + $0xc] sm:$0xf]
  %v40 = vld [vmem:[%s3] sm:$0xf]
  %v41 = vld [vmem:[%s3 + $0x4] sm:$0xf]
  %v42 = vld [vmem:[%s3 + $0x8] sm:$0xf]
  %v43 = vld [vmem:[%s3 + $0xc] sm:$0xf]
  %v46 = vunpack.c.l.b16 %v34
  %v47 = vunpack.c.l.b16 %v35
  %v48 = vpack.c.b16 %v47, %v46
  %v53 = vunpack.c.l.b16 %v40
  %v54 = vunpack.c.l.b16 %v41
  %v55 = vunpack.c.l.b16 %v42
  %v56 = vunpack.c.l.b16 %v43
  %v57 = vpack.c.b16 %v54, %v53
  %v58 = vpack.c.b16 %v56, %v55
  %vm61 = vcmask 261120
  %v63 = vsel %vm61, %v48, 0
  %65 = vmatprep.subr.bf16.mxu0 0
  %66 = vmatpush1.bf16.msra.mxu0 %v57
  %67 = vmatprep.subr.bf16.mxu0 0
  %68 = vmatpush1.bf16.msra.mxu0 %v58
  %69 = vmatprep.subr.bf16.mxu0 0
  %70 = vmatpush1.bf16.msra.mxu0 0
  %71 = vmatprep.subr.bf16.mxu0 0
  %72 = vmatpush1.bf16.msra.mxu0 0
  %73 = vmatprep.subr.bf16.mxu0 0
  %74 = vmatpush1.bf16.msra.mxu0 0
  %75 = vmatprep.subr.bf16.mxu0 0
  %76 = vmatpush1.bf16.msra.mxu0 0
  %77 = vmatprep.subr.bf16.mxu0 0
  %78 = vmatpush1.bf16.msra.mxu0 0
  %79 = vmatprep.subr.bf16.mxu0 0
  %80 = vmatpush1.bf16.msra.mxu0 0
  %81 = vmatprep.subr.bf16.mxu0 0
  %82 = vmatpush1.bf16.msra.mxu0 0
  %83 = vmatprep.subr.bf16.mxu0 0
  %84 = vmatpush1.bf16.msra.mxu0 0
  %85 = vmatprep.subr.bf16.mxu0 0
  %86 = vmatpush1.bf16.msra.mxu0 0
  %87 = vmatprep.subr.bf16.mxu0 0
  %88 = vmatpush1.bf16.msra.mxu0 0
  %89 = vmatprep.subr.bf16.mxu0 0
  %90 = vmatpush1.bf16.msra.mxu0 0
  %91 = vmatprep.subr.bf16.mxu0 0
  %92 = vmatpush1.bf16.msra.mxu0 0
  %93 = vmatprep.subr.bf16.mxu0 0
  %94 = vmatpush1.bf16.msra.mxu0 0
  %95 = vmatprep.subr.bf16.mxu0 0
  %96 = vmatpush1.bf16.msra.mxu0 0
  %97 = vmatprep.mubr.bf16.mxu0 0
  %98 = vmatmul.mubr.bf16.gmra.mrb[0].mxu0 %v63
  %v99 = vpop.f32.mrb[0].mxu0
  %v100 = vadd.f32 0.0, %v99
  %v101 = vpop.f32.mrb[0].mxu0
  %v102 = vpop.f32.mrb[0].mxu0
  %v103 = vadd.f32 0.0, %v102
  %v104 = vpop.f32.mrb[0].mxu0
  %105 = vdwg.mxu0
  %v108 = vunpack.c.l.b16 %v32
  %v109 = vunpack.c.l.b16 %v33
  %v110 = vpack.c.b16 %v109, %v108
  %v115 = vunpack.c.l.b16 %v36
  %v116 = vunpack.c.l.b16 %v37
  %v117 = vunpack.c.l.b16 %v38
  %v118 = vunpack.c.l.b16 %v39
  %v119 = vpack.c.b16 %v116, %v115
  %v120 = vpack.c.b16 %v118, %v117
  %v124 = vsel %vm61, %v110, 0
  %126 = vmatprep.subr.bf16.mxu0 0
  %127 = vmatpush1.bf16.msra.mxu0 %v119
  %128 = vmatprep.subr.bf16.mxu0 0
  %129 = vmatpush1.bf16.msra.mxu0 %v120
  %130 = vmatprep.subr.bf16.mxu0 0
  %131 = vmatpush1.bf16.msra.mxu0 0
  %132 = vmatprep.subr.bf16.mxu0 0
  %133 = vmatpush1.bf16.msra.mxu0 0
  %134 = vmatprep.subr.bf16.mxu0 0
  %135 = vmatpush1.bf16.msra.mxu0 0
  %136 = vmatprep.subr.bf16.mxu0 0
  %137 = vmatpush1.bf16.msra.mxu0 0
  %138 = vmatprep.subr.bf16.mxu0 0
  %139 = vmatpush1.bf16.msra.mxu0 0
  %140 = vmatprep.subr.bf16.mxu0 0
  %141 = vmatpush1.bf16.msra.mxu0 0
  %142 = vmatprep.subr.bf16.mxu0 0
  %143 = vmatpush1.bf16.msra.mxu0 0
  %144 = vmatprep.subr.bf16.mxu0 0
  %145 = vmatpush1.bf16.msra.mxu0 0
  %146 = vmatprep.subr.bf16.mxu0 0
  %147 = vmatpush1.bf16.msra.mxu0 0
  %148 = vmatprep.subr.bf16.mxu0 0
  %149 = vmatpush1.bf16.msra.mxu0 0
  %150 = vmatprep.subr.bf16.mxu0 0
  %151 = vmatpush1.bf16.msra.mxu0 0
  %152 = vmatprep.subr.bf16.mxu0 0
  %153 = vmatpush1.bf16.msra.mxu0 0
  %154 = vmatprep.subr.bf16.mxu0 0
  %155 = vmatpush1.bf16.msra.mxu0 0
  %156 = vmatprep.subr.bf16.mxu0 0
  %157 = vmatpush1.bf16.msra.mxu0 0
  %158 = vmatprep.mubr.bf16.mxu0 0
  %159 = vmatmul.mubr.bf16.gmra.mrb[0].mxu0 %v124
  %v160 = vpop.f32.mrb[0].mxu0
  %v161 = vadd.f32 %v100, %v160
  %v162 = vpop.f32.mrb[0].mxu0
  %v163 = vpop.f32.mrb[0].mxu0
  %v164 = vadd.f32 %v103, %v163
  %v165 = vpop.f32.mrb[0].mxu0
  %166 = vdwg.mxu0
  %v167 = vld [vmem:[%s6] sm:$0x1]
  %v169 = vlaneseq
  %v170 = vshrl.u32 %v169, 7
  %v171 = vsub.s32 0, %v170
  %v172 = vrot.slane %v167, %v171
  %v174 = vadd.f32 %v161, %v172
  %v175 = vadd.f32 %v164, %v172
  %176 = vst [vmem:[%s8] sm:$0xff] %v174
  %177 = vst [vmem:[%s8 + $0x8] sm:$0xff] %v175
  %v178 = vld [vmem:[%s4] sm:$0xf]
  %v179 = vld [vmem:[%s4 + $0x4] sm:$0xf]
  %v180 = vld [vmem:[%s4 + $0x8] sm:$0xf]
  %v181 = vld [vmem:[%s4 + $0xc] sm:$0xf]
  %v182 = vld [vmem:[%s5] sm:$0xf]
  %v183 = vld [vmem:[%s5 + $0x4] sm:$0xf]
  %v184 = vld [vmem:[%s5 + $0x8] sm:$0xf]
  %v185 = vld [vmem:[%s5 + $0xc] sm:$0xf]
  %v190 = vunpack.c.l.b16 %v182
  %v191 = vunpack.c.l.b16 %v183
  %v192 = vunpack.c.l.b16 %v184
  %v193 = vunpack.c.l.b16 %v185
  %v194 = vpack.c.b16 %v191, %v190
  %v195 = vpack.c.b16 %v193, %v192
  %198 = vmatprep.subr.bf16.mxu0 0
  %199 = vmatpush1.bf16.msra.mxu0 %v194
  %200 = vmatprep.subr.bf16.mxu0 0
  %201 = vmatpush1.bf16.msra.mxu0 %v195
  %202 = vmatprep.subr.bf16.mxu0 0
  %203 = vmatpush1.bf16.msra.mxu0 0
  %204 = vmatprep.subr.bf16.mxu0 0
  %205 = vmatpush1.bf16.msra.mxu0 0
  %206 = vmatprep.subr.bf16.mxu0 0
  %207 = vmatpush1.bf16.msra.mxu0 0
  %208 = vmatprep.subr.bf16.mxu0 0
  %209 = vmatpush1.bf16.msra.mxu0 0
  %210 = vmatprep.subr.bf16.mxu0 0
  %211 = vmatpush1.bf16.msra.mxu0 0
  %212 = vmatprep.subr.bf16.mxu0 0
  %213 = vmatpush1.bf16.msra.mxu0 0
  %214 = vmatprep.subr.bf16.mxu0 0
  %215 = vmatpush1.bf16.msra.mxu0 0
  %216 = vmatprep.subr.bf16.mxu0 0
  %217 = vmatpush1.bf16.msra.mxu0 0
  %218 = vmatprep.subr.bf16.mxu0 0
  %219 = vmatpush1.bf16.msra.mxu0 0
  %220 = vmatprep.subr.bf16.mxu0 0
  %221 = vmatpush1.bf16.msra.mxu0 0
  %222 = vmatprep.subr.bf16.mxu0 0
  %223 = vmatpush1.bf16.msra.mxu0 0
  %224 = vmatprep.subr.bf16.mxu0 0
  %225 = vmatpush1.bf16.msra.mxu0 0
  %226 = vmatprep.subr.bf16.mxu0 0
  %227 = vmatpush1.bf16.msra.mxu0 0
  %228 = vmatprep.subr.bf16.mxu0 0
  %229 = vmatpush1.bf16.msra.mxu0 0
  %230 = vmatprep.mubr.bf16.mxu0 0
  %231 = vmatmul.mubr.bf16.gmra.mrb[0].mxu0 %v63
  %v232 = vpop.f32.mrb[0].mxu0
  %v233 = vadd.f32 0.0, %v232
  %v234 = vpop.f32.mrb[0].mxu0
  %v235 = vpop.f32.mrb[0].mxu0
  %v236 = vadd.f32 0.0, %v235
  %v237 = vpop.f32.mrb[0].mxu0
  %238 = vdwg.mxu0
  %v243 = vunpack.c.l.b16 %v178
  %v244 = vunpack.c.l.b16 %v179
  %v245 = vunpack.c.l.b16 %v180
  %v246 = vunpack.c.l.b16 %v181
  %v247 = vpack.c.b16 %v244, %v243
  %v248 = vpack.c.b16 %v246, %v245
  %251 = vmatprep.subr.bf16.mxu0 0
  %252 = vmatpush1.bf16.msra.mxu0 %v247
  %253 = vmatprep.subr.bf16.mxu0 0
  %254 = vmatpush1.bf16.msra.mxu0 %v248
  %255 = vmatprep.subr.bf16.mxu0 0
  %256 = vmatpush1.bf16.msra.mxu0 0
  %257 = vmatprep.subr.bf16.mxu0 0
  %258 = vmatpush1.bf16.msra.mxu0 0
  %259 = vmatprep.subr.bf16.mxu0 0
  %260 = vmatpush1.bf16.msra.mxu0 0
  %261 = vmatprep.subr.bf16.mxu0 0
  %262 = vmatpush1.bf16.msra.mxu0 0
  %263 = vmatprep.subr.bf16.mxu0 0
  %264 = vmatpush1.bf16.msra.mxu0 0
  %265 = vmatprep.subr.bf16.mxu0 0
  %266 = vmatpush1.bf16.msra.mxu0 0
  %267 = vmatprep.subr.bf16.mxu0 0
  %268 = vmatpush1.bf16.msra.mxu0 0
  %269 = vmatprep.subr.bf16.mxu0 0
  %270 = vmatpush1.bf16.msra.mxu0 0
  %271 = vmatprep.subr.bf16.mxu0 0
  %272 = vmatpush1.bf16.msra.mxu0 0
  %273 = vmatprep.subr.bf16.mxu0 0
  %274 = vmatpush1.bf16.msra.mxu0 0
  %275 = vmatprep.subr.bf16.mxu0 0
  %276 = vmatpush1.bf16.msra.mxu0 0
  %277 = vmatprep.subr.bf16.mxu0 0
  %278 = vmatpush1.bf16.msra.mxu0 0
  %279 = vmatprep.subr.bf16.mxu0 0
  %280 = vmatpush1.bf16.msra.mxu0 0
  %281 = vmatprep.subr.bf16.mxu0 0
  %282 = vmatpush1.bf16.msra.mxu0 0
  %283 = vmatprep.mubr.bf16.mxu0 0
  %284 = vmatmul.mubr.bf16.gmra.mrb[0].mxu0 %v124
  %v285 = vpop.f32.mrb[0].mxu0
  %v286 = vadd.f32 %v233, %v285
  %v287 = vpop.f32.mrb[0].mxu0
  %v288 = vpop.f32.mrb[0].mxu0
  %v289 = vadd.f32 %v236, %v288
  %v290 = vpop.f32.mrb[0].mxu0
  %291 = vdwg.mxu0
  %v292 = vld [vmem:[%s7] sm:$0x1]
  %v294 = vlaneseq
  %v295 = vshrl.u32 %v294, 7
  %v296 = vsub.s32 0, %v295
  %v297 = vrot.slane %v292, %v296
  %v299 = vadd.f32 %v286, %v297
  %v300 = vadd.f32 %v289, %v297
  %301 = vst [vmem:[%s9] sm:$0xff] %v299
  %302 = vst [vmem:[%s9 + $0x8] sm:$0xff] %v300
  // Predicated region
  $region34: #{ctc_top_b_forward.8} parent=0 // pred_check
    _
  $region35: #{ctc_top_b_forward.8} parent=0 // pred_check_branch
    %304 = sbr.rel (0) target = $region37
  $region36: #{ctc_top_b_forward.8} parent=0 // pred_region
    _
  $region37: #{ctc_top_b_forward.8} parent=0 // pred_fallthru
    _
  // Predicated region
  $region38: #{ctc_top_b_forward.8} parent=0 // pred_check
    _
  $region39: #{ctc_top_b_forward.8} parent=0 // pred_check_branch
    %306 = sbr.rel (0) target = $region41
  $region40: #{ctc_top_b_forward.8} parent=0 // pred_region
    _
  $region41: #{ctc_top_b_forward.8} parent=0 // pred_fallthru
    _
  // Predicated region
  $region42: #{ctc_top_b_forward.8} parent=0 // pred_check
    _
  $region43: #{ctc_top_b_forward.8} parent=0 // pred_check_branch
    %308 = sbr.rel (0) target = $region45
  $region44: #{ctc_top_b_forward.8} parent=0 // pred_region
    _
  $region45: #{ctc_top_b_forward.8} parent=0 // pred_fallthru
    _
  // Predicated region
  $region46: #{ctc_top_b_forward.8} parent=0 // pred_check
    _
  $region47: #{ctc_top_b_forward.8} parent=0 // pred_check_branch
    %310 = sbr.rel (0) target = $region49
  $region48: #{ctc_top_b_forward.8} parent=0 // pred_region
    _
  $region49: #{ctc_top_b_forward.8} parent=0 // pred_fallthru
    _

// kernel: ctc_top_b_forward.7
$region0: #{ctc_top_b_forward.7}
  #allocation0 [shape = 'u32[]', space=smem, size = 0x4, offset = 0x4, fixed_abs, tag = 'smem constant byte address 0x4 - core index']
  #allocation1 [shape = 'u32[144,128]{1,0:T(1,128)}', space=vmem, size = 0x12000, scoped, tag = 'internal scratch']
  #allocation2 [shape = 'f32[4,64]{1,0:T(4,128)}', space=vmem, size = 0x800, scoped, tag = 'scratch operand']
  %s0 = inlined_call_operand.vmem [shape: f32[8,2,128], index: 0, kind: input, shape index: {}]
  %s1 = inlined_call_operand.vmem [shape: f32[8,2,128], index: 1, kind: input, shape index: {}]
  %s2 = inlined_call_operand.vmem [shape: f32[64,96], index: 2, kind: input, shape index: {}]
  %s3 = inlined_call_operand.vmem [shape: f32[4,32], index: 3, kind: input, shape index: {}]
  %s4 = inlined_call_operand.vmem [shape: bf16[8,2,32], index: 4, kind: output, shape index: {0}]
  %s5 = inlined_call_operand.vmem [shape: bf16[8,2,32], index: 5, kind: output, shape index: {1}]
  %6 = xla_tuple %s4, %s5
  %s7 = sld [smem:[#allocation0]]
  $region45: #{ctc_top_b_forward.7} parent=0
    _
  %s9 = ssub.s32 1, %s7
  %s10 = scalar_select 0, %s9, %s7
  // Predicated region
  $region2: #{ctc_top_b_forward.7} parent=0 // pred_check
    _
  $region3: #{ctc_top_b_forward.7} parent=0 // pred_check_branch
    %12 = sbr.rel (0) target = $region5
  $region4: #{ctc_top_b_forward.7} parent=0 // pred_region
    _
  $region5: #{ctc_top_b_forward.7} parent=0 // pred_fallthru
    _
  // Predicated region
  $region6: #{ctc_top_b_forward.7} parent=0 // pred_check
    _
  $region7: #{ctc_top_b_forward.7} parent=0 // pred_check_branch
    %14 = sbr.rel (0) target = $region9
  $region8: #{ctc_top_b_forward.7} parent=0 // pred_region
    %s15 = ssub.s32 0, 0
    %s16 = smul.u32 8, %s15
    %p17 = scmp.lt.s32.totalorder %s16, 7
    %s18 = scalar_select %p17, %s16, 7
    %s19 = smul.addr %s18, 2
    %s20 = scalar_lea.vmem %s1, %s19
    %s21 = ssub.s32 0, 0
    %s22 = smul.u32 8, %s21
  $region9: #{ctc_top_b_forward.7} parent=0 // pred_fallthru
    _
  // Predicated region
  $region10: #{ctc_top_b_forward.7} parent=0 // pred_check
    _
  $region11: #{ctc_top_b_forward.7} parent=0 // pred_check_branch
    %24 = sbr.rel (0) target = $region13
  $region12: #{ctc_top_b_forward.7} parent=0 // pred_region
    _
  $region13: #{ctc_top_b_forward.7} parent=0 // pred_fallthru
    _
  // Predicated region
  $region14: #{ctc_top_b_forward.7} parent=0 // pred_check
    _
  $region15: #{ctc_top_b_forward.7} parent=0 // pred_check_branch
    %26 = sbr.rel (0) target = $region17
  $region16: #{ctc_top_b_forward.7} parent=0 // pred_region
    _
  $region17: #{ctc_top_b_forward.7} parent=0 // pred_fallthru
    _
  %s27 = ssub.s32 0, 0
  %s28 = smul.u32 8, %s27
  %p29 = scmp.lt.s32.totalorder %s28, 7
  %s30 = scalar_select %p29, %s28, 7
  %s31 = smul.addr %s30, 2
  %s32 = scalar_lea.vmem %s1, %s31
  %s33 = ssub.s32 0, 0
  %s34 = smul.u32 8, %s33
  %p35 = scmp.lt.s32.totalorder %s34, 7
  %s36 = scalar_select %p35, %s34, 7
  %s37 = scalar_lea.vmem %s5, %s36
  %s38 = ssub.s32 0, 0
  %s39 = smul.u32 8, %s38
  %p40 = scmp.lt.s32.totalorder %s39, 7
  %s41 = scalar_select %p40, %s39, 7
  %s42 = smul.addr %s41, 2
  %s43 = scalar_lea.vmem %s1, %s42
  %s44 = ssub.s32 0, 0
  %s45 = smul.u32 8, %s44
  %s46 = ssub.s32 0, 0
  %s47 = smul.u32 8, %s46
  %p48 = scmp.lt.s32.totalorder %s47, 7
  %s49 = scalar_select %p48, %s47, 7
  %s50 = scalar_lea.vmem %s5, %s49
  %s51 = ssub.s32 0, 0
  %s52 = smul.u32 8, %s51
  %p53 = scmp.eq.s32.totalorder 0, 0
  // Predicated region
  $region18: #{ctc_top_b_forward.7} parent=0 // pred_check
    %p54 = pneg %p53
  $region19: #{ctc_top_b_forward.7} parent=0 // pred_check_branch
    %56 = sbr.rel (%p54) target = $region21
  $region20: #{ctc_top_b_forward.7} parent=0 // pred_region
    %vm57 = vcmask 519168
    %58 = vst.msk [vmem:[#allocation2] sm:$0xf] %vm57, 0.0
  $region21: #{ctc_top_b_forward.7} parent=0 // pred_fallthru
    _
  loop: start=0, step=1, limit=8
  $region22: #{ctc_top_b_forward.7} parent=0 // loop_pre_header
    _
  $region23: #{ctc_top_b_forward.7} parent=0 // loop_header
    %s60 = sphi 0, %s64
    %p61 = scmp.ge.s32.totalorder %s60, 8
  $region24: #{ctc_top_b_forward.7} parent=0 // loop_header_branch
    %63 = sbr.rel (%p61) target = $region28
  $region25: #{ctc_top_b_forward.7} parent=0 // loop_body
    %s65 = ssub.s32 7, %s60
    %v66 = vld [vmem:[#allocation2] sm:$0xf]
    %v67 = vld [vmem:[%s2] sm:$0xff]
    %v68 = vld [vmem:[%s2 + $0x8] sm:$0xff]
    %v69 = vld [vmem:[%s2 + $0x10] sm:$0xff]
    %v70 = vld [vmem:[%s2 + $0x18] sm:$0xff]
    %v71 = vld [vmem:[%s2 + $0x20] sm:$0xff]
    %v72 = vld [vmem:[%s2 + $0x28] sm:$0xff]
    %v73 = vld [vmem:[%s2 + $0x30] sm:$0xff]
    %v74 = vld [vmem:[%s2 + $0x38] sm:$0xff]
    %vm75 = vcmask 523264
    %v77 = vsel %vm75, %v66, 0
    %79 = vmatprep.subr.mxu0 0.0
    %80 = vmatpush1.msra.mxu0 %v67
    %81 = vmatprep.subr.mxu0 0.0
    %82 = vmatpush1.msra.mxu0 %v68
    %83 = vmatprep.subr.mxu0 0.0
    %84 = vmatpush1.msra.mxu0 %v69
    %85 = vmatprep.subr.mxu0 0.0
    %86 = vmatpush1.msra.mxu0 %v70
    %87 = vmatprep.subr.mxu0 0.0
    %88 = vmatpush1.msra.mxu0 %v71
    %89 = vmatprep.subr.mxu0 0.0
    %90 = vmatpush1.msra.mxu0 %v72
    %91 = vmatprep.subr.mxu0 0.0
    %92 = vmatpush1.msra.mxu0 %v73
    %93 = vmatprep.subr.mxu0 0.0
    %94 = vmatpush1.msra.mxu0 %v74
    %95 = vmatprep.subr.mxu0 0.0
    %96 = vmatpush1.msra.mxu0 0.0
    %97 = vmatprep.subr.mxu0 0.0
    %98 = vmatpush1.msra.mxu0 0.0
    %99 = vmatprep.subr.mxu0 0.0
    %100 = vmatpush1.msra.mxu0 0.0
    %101 = vmatprep.subr.mxu0 0.0
    %102 = vmatpush1.msra.mxu0 0.0
    %103 = vmatprep.subr.mxu0 0.0
    %104 = vmatpush1.msra.mxu0 0.0
    %105 = vmatprep.subr.mxu0 0.0
    %106 = vmatpush1.msra.mxu0 0.0
    %107 = vmatprep.subr.mxu0 0.0
    %108 = vmatpush1.msra.mxu0 0.0
    %109 = vmatprep.subr.mxu0 0.0
    %110 = vmatpush1.msra.mxu0 0.0
    %111 = vmatprep.subr.mxu0 0.0
    %112 = vmatpush1.msra.mxu0 0.0
    %113 = vmatprep.subr.mxu0 0.0
    %114 = vmatpush1.msra.mxu0 0.0
    %115 = vmatprep.subr.mxu0 0.0
    %116 = vmatpush1.msra.mxu0 0.0
    %117 = vmatprep.subr.mxu0 0.0
    %118 = vmatpush1.msra.mxu0 0.0
    %119 = vmatprep.subr.mxu0 0.0
    %120 = vmatpush1.msra.mxu0 0.0
    %121 = vmatprep.subr.mxu0 0.0
    %122 = vmatpush1.msra.mxu0 0.0
    %123 = vmatprep.subr.mxu0 0.0
    %124 = vmatpush1.msra.mxu0 0.0
    %125 = vmatprep.subr.mxu0 0.0
    %126 = vmatpush1.msra.mxu0 0.0
    %127 = vmatprep.subr.mxu0 0.0
    %128 = vmatpush1.msra.mxu0 0.0
    %129 = vmatprep.subr.mxu0 0.0
    %130 = vmatpush1.msra.mxu0 0.0
    %131 = vmatprep.subr.mxu0 0.0
    %132 = vmatpush1.msra.mxu0 0.0
    %133 = vmatprep.subr.mxu0 0.0
    %134 = vmatpush1.msra.mxu0 0.0
    %135 = vmatprep.subr.mxu0 0.0
    %136 = vmatpush1.msra.mxu0 0.0
    %137 = vmatprep.subr.mxu0 0.0
    %138 = vmatpush1.msra.mxu0 0.0
    %139 = vmatprep.subr.mxu0 0.0
    %140 = vmatpush1.msra.mxu0 0.0
    %141 = vmatprep.subr.mxu0 0.0
    %142 = vmatpush1.msra.mxu0 0.0
    %143 = vmatprep.mubr.f32.mxu0 0.0
    %144 = vmatmul.mubr.f32.gmra.mrb[0].mxu0 %v77
    %v145 = vpop.f32.mrb[0].mxu0
    %v146 = vadd.f32 0.0, %v145
    %v147 = vpop.f32.mrb[0].mxu0
    %148 = vdwg.mxu0
    %149 = vrot.lane.b32.xlu0 %v66, 96
    %v150 = vpop.permute.xlu0 %149
    %v152 = vadd.f32 %v66, %v150
    %s153 = smul.u32 %s60, 2
    %s154 = scalar_lea.vmem %s0, %s153
    %v155 = vld [vmem:[%s154] sm:$0x3]
    %s156 = smul.u32 %s65, 2
    %s157 = scalar_lea.vmem %s43, %s156
    %v158 = vld [vmem:[%s157] sm:$0x3]
    %v160 = vrot.slane %v158, 6
    %vm162 = vcmask 1041408
    %v163 = vsel %vm162, %v155, %v160
    %v164 = vadd.f32 %v163, %v146
    %v165 = vxor.u32 %v164, 2147483648
    %v166 = vmul.f32 %v165, 1.442695
    %v167 = vpow.pop %v166
    %v168 = vadd.f32 %v167, 1.0
    %v169 = vrcp.pop %v168
    %v170 = vmul.f32 1.0, %v169
    %v171 = vld [vmem:[%s3] sm:$0xf]
    %173 = vrot.lane.b32.xlu0 %v171, 64
    %v174 = vpop.permute.xlu0 %173
    %v176 = vadd.f32 %v146, %v174
    %178 = vrot.lane.b32.xlu0 %v176, 64
    %v179 = vpop.permute.xlu0 %178
    %v181 = vmul.f32 %v170, %v179
    %183 = vrot.lane.b32.xlu0 %v181, 64
    %v184 = vpop.permute.xlu0 %183
    %v186 = vadd.f32 %v163, %v184
    %v187 = vtanh.pop %v186
    %v188 = vsub.f32 1.0, %v170
    %190 = vrot.lane.b32.xlu0 %v187, 96
    %v191 = vpop.permute.xlu0 %190
    %v193 = vmul.f32 %v188, %v191
    %195 = vrot.lane.b32.xlu0 %v152, 32
    %v196 = vpop.permute.xlu0 %195
    %v198 = vmul.f32 %v170, %v196
    %v199 = vadd.f32 %v193, %v198
    %201 = vrot.lane.b32.xlu0 %v199, 96
    %v202 = vpop.permute.xlu0 %201
    %vm204 = vcmask 254976
    %205 = vst.msk [vmem:[#allocation2] sm:$0x3] %vm204, %v202
    %v206 = vpack.c.bf16 %v199, %v199
    %v209 = vunpack.c.l.s4 1966171168
    %v210 = vunpack.c.0.s8 %v209
    %v211 = vlaneseq
    %v212 = vshrl.u32 %v211, 7
    %v213 = vsub.s32 %v210, %v212
    %v214 = vrot.slane %v206, %v213
    %v216 = vunpack.c.l.s4 1966171168
    %v217 = vunpack.c.0.s8 %v216
    %v218 = vlaneseq
    %v219 = vshrl.u32 %v218, 7
    %v220 = vsub.s32 %v217, %v219
    %v221 = vrot.slane %v214, %v220
    %222 = vrot.lane.b32.xlu0 %v221, 96
    %v223 = vpop.permute.xlu0 %222
    %s225 = scalar_lea.vmem %s4, %s60
    %vm226 = vcmask 253952
    %227 = vst.msk [vmem:[%s225] sm:$0x1] %vm226, %v223
    %vm228 = vcmask 519426
    %229 = vst.msk [vmem:[#allocation2] sm:$0xc] %vm228, %v199
    %v230 = vcombine.high %v214, %v214
    %v232 = vunpack.c.l.s4 1966171168
    %v233 = vunpack.c.0.s8 %v232
    %v234 = vlaneseq
    %v235 = vshrl.u32 %v234, 7
    %v236 = vsub.s32 %v233, %v235
    %v237 = vrot.slane %v230, %v236
    %238 = vrot.lane.b32.xlu0 %v237, 96
    %v239 = vpop.permute.xlu0 %238
    %s241 = scalar_lea.vmem %s50, %s65
    %242 = vst.msk [vmem:[%s241] sm:$0x1] %vm226, %v239
  $region26: #{ctc_top_b_forward.7} parent=0 // loop_footer
    %s64 = sadd.s32 1, %s60
  $region27: #{ctc_top_b_forward.7} parent=0 // loop_footer_branch
    %59 = sbr.rel target = $region23
  $region28: #{ctc_top_b_forward.7} parent=0 // loop_exit
    _
  %s243 = ssub.s32 0, 0
  %s244 = smul.u32 8, %s243
  %p245 = scmp.lt.s32.totalorder %s244, 7
  %s246 = scalar_select %p245, %s244, 7
  %s247 = scalar_lea.vmem %s5, %s246
  // Predicated region
  $region29: #{ctc_top_b_forward.7} parent=0 // pred_check
    _
  $region30: #{ctc_top_b_forward.7} parent=0 // pred_check_branch
    %249 = sbr.rel (0) target = $region32
  $region31: #{ctc_top_b_forward.7} parent=0 // pred_region
    _
  $region32: #{ctc_top_b_forward.7} parent=0 // pred_fallthru
    _
  // Predicated region
  $region33: #{ctc_top_b_forward.7} parent=0 // pred_check
    _
  $region34: #{ctc_top_b_forward.7} parent=0 // pred_check_branch
    %251 = sbr.rel (0) target = $region36
  $region35: #{ctc_top_b_forward.7} parent=0 // pred_region
    %s252 = ssub.s32 0, 0
    %s253 = smul.u32 8, %s252
  $region36: #{ctc_top_b_forward.7} parent=0 // pred_fallthru
    _
  // Predicated region
  $region37: #{ctc_top_b_forward.7} parent=0 // pred_check
    _
  $region38: #{ctc_top_b_forward.7} parent=0 // pred_check_branch
    %255 = sbr.rel (0) target = $region40
  $region39: #{ctc_top_b_forward.7} parent=0 // pred_region
    _
  $region40: #{ctc_top_b_forward.7} parent=0 // pred_fallthru
    _
  // Predicated region
  $region41: #{ctc_top_b_forward.7} parent=0 // pred_check
    _
  $region42: #{ctc_top_b_forward.7} parent=0 // pred_check_branch
    %257 = sbr.rel (0) target = $region44
  $region43: #{ctc_top_b_forward.7} parent=0 // pred_region
    %s258 = ssub.s32 0, 0
    %s259 = smul.u32 8, %s258
    %p260 = scmp.lt.s32.totalorder %s259, 7
    %s261 = scalar_select %p260, %s259, 7
    %s262 = scalar_lea.vmem %s5, %s261
  $region44: #{ctc_top_b_forward.7} parent=0 // pred_fallthru
    _

// kernel: ctc_top_b_forward.6
$region0: #{ctc_top_b_forward.6}
  #allocation0 [shape = 'u32[]', space=smem, size = 0x4, offset = 0x4, fixed_abs, tag = 'smem constant byte address 0x4 - core index']
  #allocation1 [shape = 'u32[144,128]{1,0:T(1,128)}', space=vmem, size = 0x12000, scoped, tag = 'internal scratch']
  %s0 = inlined_call_operand.vmem [shape: f32[16,32], index: 0, kind: input, shape index: {}]
  %s1 = inlined_call_operand.vmem [shape: bf16[32,128], index: 1, kind: input, shape index: {}]
  %s2 = inlined_call_operand.vmem [shape: bf16[32,128], index: 2, kind: input, shape index: {}]
  %s3 = inlined_call_operand.vmem [shape: f32[1,128], index: 3, kind: input, shape index: {}]
  %s4 = inlined_call_operand.vmem [shape: f32[1,128], index: 4, kind: input, shape index: {}]
  %s5 = inlined_call_operand.vmem [shape: f32[16,128], index: 5, kind: output, shape index: {0}]
  %s6 = inlined_call_operand.vmem [shape: f32[16,128], index: 6, kind: output, shape index: {1}]
  %7 = xla_tuple %s5, %s6
  %s8 = sld [smem:[#allocation0]]
  $region38: #{ctc_top_b_forward.6} parent=0
    _
  %s10 = ssub.s32 1, %s8
  %s11 = scalar_select 0, %s10, %s8
  // Predicated region
  $region2: #{ctc_top_b_forward.6} parent=0 // pred_check
    _
  $region3: #{ctc_top_b_forward.6} parent=0 // pred_check_branch
    %13 = sbr.rel (0) target = $region5
  $region4: #{ctc_top_b_forward.6} parent=0 // pred_region
    _
  $region5: #{ctc_top_b_forward.6} parent=0 // pred_fallthru
    _
  // Predicated region
  $region6: #{ctc_top_b_forward.6} parent=0 // pred_check
    _
  $region7: #{ctc_top_b_forward.6} parent=0 // pred_check_branch
    %15 = sbr.rel (0) target = $region9
  $region8: #{ctc_top_b_forward.6} parent=0 // pred_region
    _
  $region9: #{ctc_top_b_forward.6} parent=0 // pred_fallthru
    _
  // Predicated region
  $region10: #{ctc_top_b_forward.6} parent=0 // pred_check
    _
  $region11: #{ctc_top_b_forward.6} parent=0 // pred_check_branch
    %17 = sbr.rel (0) target = $region13
  $region12: #{ctc_top_b_forward.6} parent=0 // pred_region
    _
  $region13: #{ctc_top_b_forward.6} parent=0 // pred_fallthru
    _
  // Predicated region
  $region14: #{ctc_top_b_forward.6} parent=0 // pred_check
    _
  $region15: #{ctc_top_b_forward.6} parent=0 // pred_check_branch
    %19 = sbr.rel (0) target = $region17
  $region16: #{ctc_top_b_forward.6} parent=0 // pred_region
    _
  $region17: #{ctc_top_b_forward.6} parent=0 // pred_fallthru
    _
  // Predicated region
  $region18: #{ctc_top_b_forward.6} parent=0 // pred_check
    _
  $region19: #{ctc_top_b_forward.6} parent=0 // pred_check_branch
    %21 = sbr.rel (0) target = $region21
  $region20: #{ctc_top_b_forward.6} parent=0 // pred_region
    _
  $region21: #{ctc_top_b_forward.6} parent=0 // pred_fallthru
    _
  %v23 = vld [vmem:[%s0] sm:$0xff]
  %v24 = vld [vmem:[%s0 + $0x8] sm:$0xff]
  %v25 = vpack.c.bf16 %v24, %v23
  %v26 = vld [vmem:[%s1] sm:$0xf]
  %v27 = vld [vmem:[%s1 + $0x4] sm:$0xf]
  %v28 = vld [vmem:[%s1 + $0x8] sm:$0xf]
  %v29 = vld [vmem:[%s1 + $0xc] sm:$0xf]
  %v30 = vld [vmem:[%s3] sm:$0x1]
  %v32 = vlaneseq
  %v33 = vshrl.u32 %v32, 7
  %v34 = vsub.s32 0, %v33
  %v35 = vrot.slane %v30, %v34
  %v41 = vunpack.c.l.b16 %v26
  %v42 = vunpack.c.l.b16 %v27
  %v43 = vunpack.c.l.b16 %v28
  %v44 = vunpack.c.l.b16 %v29
  %v45 = vpack.c.b16 %v42, %v41
  %v46 = vpack.c.b16 %v44, %v43
  %vm49 = vcmask 261120
  %v51 = vsel %vm49, %v25, 0
  %53 = vmatprep.subr.bf16.mxu0 0
  %54 = vmatpush1.bf16.msra.mxu0 %v45
  %55 = vmatprep.subr.bf16.mxu0 0
  %56 = vmatpush1.bf16.msra.mxu0 %v46
  %57 = vmatprep.subr.bf16.mxu0 0
  %58 = vmatpush1.bf16.msra.mxu0 0
  %59 = vmatprep.subr.bf16.mxu0 0
  %60 = vmatpush1.bf16.msra.mxu0 0
  %61 = vmatprep.subr.bf16.mxu0 0
  %62 = vmatpush1.bf16.msra.mxu0 0
  %63 = vmatprep.subr.bf16.mxu0 0
  %64 = vmatpush1.bf16.msra.mxu0 0
  %65 = vmatprep.subr.bf16.mxu0 0
  %66 = vmatpush1.bf16.msra.mxu0 0
  %67 = vmatprep.subr.bf16.mxu0 0
  %68 = vmatpush1.bf16.msra.mxu0 0
  %69 = vmatprep.subr.bf16.mxu0 0
  %70 = vmatpush1.bf16.msra.mxu0 0
  %71 = vmatprep.subr.bf16.mxu0 0
  %72 = vmatpush1.bf16.msra.mxu0 0
  %73 = vmatprep.subr.bf16.mxu0 0
  %74 = vmatpush1.bf16.msra.mxu0 0
  %75 = vmatprep.subr.bf16.mxu0 0
  %76 = vmatpush1.bf16.msra.mxu0 0
  %77 = vmatprep.subr.bf16.mxu0 0
  %78 = vmatpush1.bf16.msra.mxu0 0
  %79 = vmatprep.subr.bf16.mxu0 0
  %80 = vmatpush1.bf16.msra.mxu0 0
  %81 = vmatprep.subr.bf16.mxu0 0
  %82 = vmatpush1.bf16.msra.mxu0 0
  %83 = vmatprep.subr.bf16.mxu0 0
  %84 = vmatpush1.bf16.msra.mxu0 0
  %85 = vmatprep.mubr.bf16.mxu0 0
  %86 = vmatmul.mubr.bf16.gmra.mrb[0].mxu0 %v51
  %v87 = vpop.f32.mrb[0].mxu0
  %v88 = vadd.f32 %v35, %v87
  %v89 = vpop.f32.mrb[0].mxu0
  %v90 = vpop.f32.mrb[0].mxu0
  %v91 = vadd.f32 %v35, %v90
  %v92 = vpop.f32.mrb[0].mxu0
  %93 = vdwg.mxu0
  %94 = vst [vmem:[%s5] sm:$0xff] %v88
  %95 = vst [vmem:[%s5 + $0x8] sm:$0xff] %v91
  %v96 = vld [vmem:[%s2] sm:$0xf]
  %v97 = vld [vmem:[%s2 + $0x4] sm:$0xf]
  %v98 = vld [vmem:[%s2 + $0x8] sm:$0xf]
  %v99 = vld [vmem:[%s2 + $0xc] sm:$0xf]
  %v100 = vld [vmem:[%s4] sm:$0x1]
  %v102 = vlaneseq
  %v103 = vshrl.u32 %v102, 7
  %v104 = vsub.s32 0, %v103
  %v105 = vrot.slane %v100, %v104
  %v111 = vunpack.c.l.b16 %v96
  %v112 = vunpack.c.l.b16 %v97
  %v113 = vunpack.c.l.b16 %v98
  %v114 = vunpack.c.l.b16 %v99
  %v115 = vpack.c.b16 %v112, %v111
  %v116 = vpack.c.b16 %v114, %v113
  %119 = vmatprep.subr.bf16.mxu0 0
  %120 = vmatpush1.bf16.msra.mxu0 %v115
  %121 = vmatprep.subr.bf16.mxu0 0
  %122 = vmatpush1.bf16.msra.mxu0 %v116
  %123 = vmatprep.subr.bf16.mxu0 0
  %124 = vmatpush1.bf16.msra.mxu0 0
  %125 = vmatprep.subr.bf16.mxu0 0
  %126 = vmatpush1.bf16.msra.mxu0 0
  %127 = vmatprep.subr.bf16.mxu0 0
  %128 = vmatpush1.bf16.msra.mxu0 0
  %129 = vmatprep.subr.bf16.mxu0 0
  %130 = vmatpush1.bf16.msra.mxu0 0
  %131 = vmatprep.subr.bf16.mxu0 0
  %132 = vmatpush1.bf16.msra.mxu0 0
  %133 = vmatprep.subr.bf16.mxu0 0
  %134 = vmatpush1.bf16.msra.mxu0 0
  %135 = vmatprep.subr.bf16.mxu0 0
  %136 = vmatpush1.bf16.msra.mxu0 0
  %137 = vmatprep.subr.bf16.mxu0 0
  %138 = vmatpush1.bf16.msra.mxu0 0
  %139 = vmatprep.subr.bf16.mxu0 0
  %140 = vmatpush1.bf16.msra.mxu0 0
  %141 = vmatprep.subr.bf16.mxu0 0
  %142 = vmatpush1.bf16.msra.mxu0 0
  %143 = vmatprep.subr.bf16.mxu0 0
  %144 = vmatpush1.bf16.msra.mxu0 0
  %145 = vmatprep.subr.bf16.mxu0 0
  %146 = vmatpush1.bf16.msra.mxu0 0
  %147 = vmatprep.subr.bf16.mxu0 0
  %148 = vmatpush1.bf16.msra.mxu0 0
  %149 = vmatprep.subr.bf16.mxu0 0
  %150 = vmatpush1.bf16.msra.mxu0 0
  %151 = vmatprep.mubr.bf16.mxu0 0
  %152 = vmatmul.mubr.bf16.gmra.mrb[0].mxu0 %v51
  %v153 = vpop.f32.mrb[0].mxu0
  %v154 = vadd.f32 %v105, %v153
  %v155 = vpop.f32.mrb[0].mxu0
  %v156 = vpop.f32.mrb[0].mxu0
  %v157 = vadd.f32 %v105, %v156
  %v158 = vpop.f32.mrb[0].mxu0
  %159 = vdwg.mxu0
  %160 = vst [vmem:[%s6] sm:$0xff] %v154
  %161 = vst [vmem:[%s6 + $0x8] sm:$0xff] %v157
  // Predicated region
  $region22: #{ctc_top_b_forward.6} parent=0 // pred_check
    _
  $region23: #{ctc_top_b_forward.6} parent=0 // pred_check_branch
    %163 = sbr.rel (0) target = $region25
  $region24: #{ctc_top_b_forward.6} parent=0 // pred_region
    _
  $region25: #{ctc_top_b_forward.6} parent=0 // pred_fallthru
    _
  // Predicated region
  $region26: #{ctc_top_b_forward.6} parent=0 // pred_check
    _
  $region27: #{ctc_top_b_forward.6} parent=0 // pred_check_branch
    %165 = sbr.rel (0) target = $region29
  $region28: #{ctc_top_b_forward.6} parent=0 // pred_region
    _
  $region29: #{ctc_top_b_forward.6} parent=0 // pred_fallthru
    _
  // Predicated region
  $region30: #{ctc_top_b_forward.6} parent=0 // pred_check
    _
  $region31: #{ctc_top_b_forward.6} parent=0 // pred_check_branch
    %167 = sbr.rel (0) target = $region33
  $region32: #{ctc_top_b_forward.6} parent=0 // pred_region
    _
  $region33: #{ctc_top_b_forward.6} parent=0 // pred_fallthru
    _
  // Predicated region
  $region34: #{ctc_top_b_forward.6} parent=0 // pred_check
    _
  $region35: #{ctc_top_b_forward.6} parent=0 // pred_check_branch
    %169 = sbr.rel (0) target = $region37
  $region36: #{ctc_top_b_forward.6} parent=0 // pred_region
    _
  $region37: #{ctc_top_b_forward.6} parent=0 // pred_fallthru
    _

// kernel: ctc_top_b_forward.10
$region0: #{ctc_top_b_forward.10}
  #allocation0 [shape = 'u32[]', space=smem, size = 0x4, offset = 0x4, fixed_abs, tag = 'smem constant byte address 0x4 - core index']
  #allocation1 [shape = 'u32[144,128]{1,0:T(1,128)}', space=vmem, size = 0x12000, scoped, tag = 'internal scratch']
  %s0 = inlined_call_operand.vmem [shape: bf16[16,32], index: 0, kind: input, shape index: {}]
  %s1 = inlined_call_operand.vmem [shape: bf16[16,32], index: 1, kind: input, shape index: {}]
  %s2 = inlined_call_operand.vmem [shape: bf16[32,128], index: 2, kind: input, shape index: {}]
  %s3 = inlined_call_operand.vmem [shape: bf16[32,128], index: 3, kind: input, shape index: {}]
  %s4 = inlined_call_operand.vmem [shape: f32[1,128], index: 4, kind: input, shape index: {}]
  %s5 = inlined_call_operand.hbm [shape: f32[16,128], index: 5, kind: output, shape index: {}]
  %s6 = sld [smem:[#allocation0]]
  $region30: #{ctc_top_b_forward.10} parent=0
    _
  %s8 = ssub.s32 1, %s6
  %s9 = scalar_select 0, %s8, %s6
  $region1: #{ctc_top_b_forward.10} parent=0
    #allocation2 [shape = 'u8[8192]{0}', space=vmem, size = 0x2000, scoped, tag = 'output window, operand 0, single buffered']
    #allocation3 [shape = 's32[1]{0}', space=sflag, size = 0x4, scoped, tag = 'scoped memory for ctc_top_b_forward.10']
    %10 = vsyncpa [#allocation3], 0
    // Predicated region
    $region2: #{ctc_top_b_forward.10} parent=1 // pred_check
      _
    $region3: #{ctc_top_b_forward.10} parent=1 // pred_check_branch
      %12 = sbr.rel (0) target = $region5
    $region4: #{ctc_top_b_forward.10} parent=1 // pred_region
      _
    $region5: #{ctc_top_b_forward.10} parent=1 // pred_fallthru
      _
    // Predicated region
    $region6: #{ctc_top_b_forward.10} parent=1 // pred_check
      _
    $region7: #{ctc_top_b_forward.10} parent=1 // pred_check_branch
      %14 = sbr.rel (0) target = $region9
    $region8: #{ctc_top_b_forward.10} parent=1 // pred_region
      _
    $region9: #{ctc_top_b_forward.10} parent=1 // pred_fallthru
      _
    // Predicated region
    $region10: #{ctc_top_b_forward.10} parent=1 // pred_check
      _
    $region11: #{ctc_top_b_forward.10} parent=1 // pred_check_branch
      %16 = sbr.rel (0) target = $region13
    $region12: #{ctc_top_b_forward.10} parent=1 // pred_region
      _
    $region13: #{ctc_top_b_forward.10} parent=1 // pred_fallthru
      _
    // Predicated region
    $region14: #{ctc_top_b_forward.10} parent=1 // pred_check
      _
    $region15: #{ctc_top_b_forward.10} parent=1 // pred_check_branch
      %18 = sbr.rel (0) target = $region17
    $region16: #{ctc_top_b_forward.10} parent=1 // pred_region
      _
    $region17: #{ctc_top_b_forward.10} parent=1 // pred_fallthru
      _
    // Predicated region
    $region18: #{ctc_top_b_forward.10} parent=1 // pred_check
      _
    $region19: #{ctc_top_b_forward.10} parent=1 // pred_check_branch
      %20 = sbr.rel (0) target = $region21
    $region20: #{ctc_top_b_forward.10} parent=1 // pred_region
      _
    $region21: #{ctc_top_b_forward.10} parent=1 // pred_fallthru
      _
    %v22 = vld [vmem:[%s0] sm:$0xf]
    %v23 = vld [vmem:[%s0 + $0x4] sm:$0xf]
    %v24 = vld [vmem:[%s1] sm:$0xf]
    %v25 = vld [vmem:[%s1 + $0x4] sm:$0xf]
    %v26 = vld [vmem:[%s2] sm:$0xf]
    %v27 = vld [vmem:[%s2 + $0x4] sm:$0xf]
    %v28 = vld [vmem:[%s2 + $0x8] sm:$0xf]
    %v29 = vld [vmem:[%s2 + $0xc] sm:$0xf]
    %v30 = vld [vmem:[%s3] sm:$0xf]
    %v31 = vld [vmem:[%s3 + $0x4] sm:$0xf]
    %v32 = vld [vmem:[%s3 + $0x8] sm:$0xf]
    %v33 = vld [vmem:[%s3 + $0xc] sm:$0xf]
    %v36 = vunpack.c.l.b16 %v24
    %v37 = vunpack.c.l.b16 %v25
    %v38 = vpack.c.b16 %v37, %v36
    %v43 = vunpack.c.l.b16 %v30
    %v44 = vunpack.c.l.b16 %v31
    %v45 = vunpack.c.l.b16 %v32
    %v46 = vunpack.c.l.b16 %v33
    %v47 = vpack.c.b16 %v44, %v43
    %v48 = vpack.c.b16 %v46, %v45
    %vm51 = vcmask 261120
    %v53 = vsel %vm51, %v38, 0
    %55 = vmatprep.subr.bf16.mxu0 0
    %56 = vmatpush1.bf16.msra.mxu0 %v47
    %57 = vmatprep.subr.bf16.mxu0 0
    %58 = vmatpush1.bf16.msra.mxu0 %v48
    %59 = vmatprep.subr.bf16.mxu0 0
    %60 = vmatpush1.bf16.msra.mxu0 0
    %61 = vmatprep.subr.bf16.mxu0 0
    %62 = vmatpush1.bf16.msra.mxu0 0
    %63 = vmatprep.subr.bf16.mxu0 0
    %64 = vmatpush1.bf16.msra.mxu0 0
    %65 = vmatprep.subr.bf16.mxu0 0
    %66 = vmatpush1.bf16.msra.mxu0 0
    %67 = vmatprep.subr.bf16.mxu0 0
    %68 = vmatpush1.bf16.msra.mxu0 0
    %69 = vmatprep.subr.bf16.mxu0 0
    %70 = vmatpush1.bf16.msra.mxu0 0
    %71 = vmatprep.subr.bf16.mxu0 0
    %72 = vmatpush1.bf16.msra.mxu0 0
    %73 = vmatprep.subr.bf16.mxu0 0
    %74 = vmatpush1.bf16.msra.mxu0 0
    %75 = vmatprep.subr.bf16.mxu0 0
    %76 = vmatpush1.bf16.msra.mxu0 0
    %77 = vmatprep.subr.bf16.mxu0 0
    %78 = vmatpush1.bf16.msra.mxu0 0
    %79 = vmatprep.subr.bf16.mxu0 0
    %80 = vmatpush1.bf16.msra.mxu0 0
    %81 = vmatprep.subr.bf16.mxu0 0
    %82 = vmatpush1.bf16.msra.mxu0 0
    %83 = vmatprep.subr.bf16.mxu0 0
    %84 = vmatpush1.bf16.msra.mxu0 0
    %85 = vmatprep.subr.bf16.mxu0 0
    %86 = vmatpush1.bf16.msra.mxu0 0
    %87 = vmatprep.mubr.bf16.mxu0 0
    %88 = vmatmul.mubr.bf16.gmra.mrb[0].mxu0 %v53
    %v89 = vpop.f32.mrb[0].mxu0
    %v90 = vadd.f32 0.0, %v89
    %v91 = vpop.f32.mrb[0].mxu0
    %v92 = vpop.f32.mrb[0].mxu0
    %v93 = vadd.f32 0.0, %v92
    %v94 = vpop.f32.mrb[0].mxu0
    %95 = vdwg.mxu0
    %v98 = vunpack.c.l.b16 %v22
    %v99 = vunpack.c.l.b16 %v23
    %v100 = vpack.c.b16 %v99, %v98
    %v105 = vunpack.c.l.b16 %v26
    %v106 = vunpack.c.l.b16 %v27
    %v107 = vunpack.c.l.b16 %v28
    %v108 = vunpack.c.l.b16 %v29
    %v109 = vpack.c.b16 %v106, %v105
    %v110 = vpack.c.b16 %v108, %v107
    %v114 = vsel %vm51, %v100, 0
    %116 = vmatprep.subr.bf16.mxu0 0
    %117 = vmatpush1.bf16.msra.mxu0 %v109
    %118 = vmatprep.subr.bf16.mxu0 0
    %119 = vmatpush1.bf16.msra.mxu0 %v110
    %120 = vmatprep.subr.bf16.mxu0 0
    %121 = vmatpush1.bf16.msra.mxu0 0
    %122 = vmatprep.subr.bf16.mxu0 0
    %123 = vmatpush1.bf16.msra.mxu0 0
    %124 = vmatprep.subr.bf16.mxu0 0
    %125 = vmatpush1.bf16.msra.mxu0 0
    %126 = vmatprep.subr.bf16.mxu0 0
    %127 = vmatpush1.bf16.msra.mxu0 0
    %128 = vmatprep.subr.bf16.mxu0 0
    %129 = vmatpush1.bf16.msra.mxu0 0
    %130 = vmatprep.subr.bf16.mxu0 0
    %131 = vmatpush1.bf16.msra.mxu0 0
    %132 = vmatprep.subr.bf16.mxu0 0
    %133 = vmatpush1.bf16.msra.mxu0 0
    %134 = vmatprep.subr.bf16.mxu0 0
    %135 = vmatpush1.bf16.msra.mxu0 0
    %136 = vmatprep.subr.bf16.mxu0 0
    %137 = vmatpush1.bf16.msra.mxu0 0
    %138 = vmatprep.subr.bf16.mxu0 0
    %139 = vmatpush1.bf16.msra.mxu0 0
    %140 = vmatprep.subr.bf16.mxu0 0
    %141 = vmatpush1.bf16.msra.mxu0 0
    %142 = vmatprep.subr.bf16.mxu0 0
    %143 = vmatpush1.bf16.msra.mxu0 0
    %144 = vmatprep.subr.bf16.mxu0 0
    %145 = vmatpush1.bf16.msra.mxu0 0
    %146 = vmatprep.subr.bf16.mxu0 0
    %147 = vmatpush1.bf16.msra.mxu0 0
    %148 = vmatprep.mubr.bf16.mxu0 0
    %149 = vmatmul.mubr.bf16.gmra.mrb[0].mxu0 %v114
    %v150 = vpop.f32.mrb[0].mxu0
    %v151 = vadd.f32 %v90, %v150
    %v152 = vpop.f32.mrb[0].mxu0
    %v153 = vpop.f32.mrb[0].mxu0
    %v154 = vadd.f32 %v93, %v153
    %v155 = vpop.f32.mrb[0].mxu0
    %156 = vdwg.mxu0
    %v157 = vld [vmem:[%s4] sm:$0x1]
    %v159 = vlaneseq
    %v160 = vshrl.u32 %v159, 7
    %v161 = vsub.s32 0, %v160
    %v162 = vrot.slane %v157, %v161
    %v164 = vadd.f32 %v151, %v162
    %v165 = vadd.f32 %v154, %v162
    %166 = vst [vmem:[#allocation2] sm:$0xff] %v164
    %167 = vst [vmem:[#allocation2 + $0x8] sm:$0xff] %v165
    // Predicated region
    $region22: #{ctc_top_b_forward.10} parent=1 // pred_check
      _
    $region23: #{ctc_top_b_forward.10} parent=1 // pred_check_branch
      %169 = sbr.rel (0) target = $region25
    $region24: #{ctc_top_b_forward.10} parent=1 // pred_region
      %s171 = ssub.s32 256, 256
      %172 = vsyncadd [#allocation3], %s171
      %s173 = sshll.u32 [#allocation2], 4
      %s174 = int_to_ptr.vmem [resolvable:$true] %s173
      %179 = dma.vmem_to_hbm [thread:$0]  %s174, 256, %s5, [#allocation3], 128, 128, 8
    $region25: #{ctc_top_b_forward.10} parent=1 // pred_fallthru
      _
    // Predicated region
    $region26: #{ctc_top_b_forward.10} parent=1 // pred_check
      _
    $region27: #{ctc_top_b_forward.10} parent=1 // pred_check_branch
      %181 = sbr.rel (0) target = $region29
    $region28: #{ctc_top_b_forward.10} parent=1 // pred_region
      %182 = dma.done [#allocation3], 256
    $region29: #{ctc_top_b_forward.10} parent=1 // pred_fallthru
      _
    %183 = vsyncpa [#allocation3], 1

// kernel: ctc_top_b_forward.11
$region0: #{ctc_top_b_forward.11}
  #allocation0 [shape = 'u32[]', space=smem, size = 0x4, offset = 0x4, fixed_abs, tag = 'smem constant byte address 0x4 - core index']
  #allocation1 [shape = 'u32[144,128]{1,0:T(1,128)}', space=vmem, size = 0x12000, scoped, tag = 'internal scratch']
  %s0 = inlined_call_operand.vmem [shape: f32[16,32], index: 0, kind: input, shape index: {}]
  %s1 = inlined_call_operand.vmem [shape: f32[16,32], index: 1, kind: input, shape index: {}]
  %s2 = inlined_call_operand.vmem [shape: f32[16,32], index: 2, kind: input, shape index: {}]
  %s3 = inlined_call_operand.vmem [shape: bf16[32,128], index: 3, kind: input, shape index: {}]
  %s4 = inlined_call_operand.vmem [shape: bf16[32,128], index: 4, kind: input, shape index: {}]
  %s5 = inlined_call_operand.vmem [shape: bf16[32,128], index: 5, kind: input, shape index: {}]
  %s6 = inlined_call_operand.vmem [shape: f32[1,128], index: 6, kind: input, shape index: {}]
  %s7 = inlined_call_operand.hbm [shape: f32[16,128], index: 7, kind: output, shape index: {}]
  %s8 = sld [smem:[#allocation0]]
  $region38: #{ctc_top_b_forward.11} parent=0
    _
  %s10 = ssub.s32 1, %s8
  %s11 = scalar_select 0, %s10, %s8
  $region1: #{ctc_top_b_forward.11} parent=0
    #allocation2 [shape = 'u8[8192]{0}', space=vmem, size = 0x2000, scoped, tag = 'output window, operand 0, single buffered']
    #allocation3 [shape = 's32[1]{0}', space=sflag, size = 0x4, scoped, tag = 'scoped memory for ctc_top_b_forward.11']
    %12 = vsyncpa [#allocation3], 0
    // Predicated region
    $region2: #{ctc_top_b_forward.11} parent=1 // pred_check
      _
    $region3: #{ctc_top_b_forward.11} parent=1 // pred_check_branch
      %14 = sbr.rel (0) target = $region5
    $region4: #{ctc_top_b_forward.11} parent=1 // pred_region
      _
    $region5: #{ctc_top_b_forward.11} parent=1 // pred_fallthru
      _
    // Predicated region
    $region6: #{ctc_top_b_forward.11} parent=1 // pred_check
      _
    $region7: #{ctc_top_b_forward.11} parent=1 // pred_check_branch
      %16 = sbr.rel (0) target = $region9
    $region8: #{ctc_top_b_forward.11} parent=1 // pred_region
      _
    $region9: #{ctc_top_b_forward.11} parent=1 // pred_fallthru
      _
    // Predicated region
    $region10: #{ctc_top_b_forward.11} parent=1 // pred_check
      _
    $region11: #{ctc_top_b_forward.11} parent=1 // pred_check_branch
      %18 = sbr.rel (0) target = $region13
    $region12: #{ctc_top_b_forward.11} parent=1 // pred_region
      _
    $region13: #{ctc_top_b_forward.11} parent=1 // pred_fallthru
      _
    // Predicated region
    $region14: #{ctc_top_b_forward.11} parent=1 // pred_check
      _
    $region15: #{ctc_top_b_forward.11} parent=1 // pred_check_branch
      %20 = sbr.rel (0) target = $region17
    $region16: #{ctc_top_b_forward.11} parent=1 // pred_region
      _
    $region17: #{ctc_top_b_forward.11} parent=1 // pred_fallthru
      _
    // Predicated region
    $region18: #{ctc_top_b_forward.11} parent=1 // pred_check
      _
    $region19: #{ctc_top_b_forward.11} parent=1 // pred_check_branch
      %22 = sbr.rel (0) target = $region21
    $region20: #{ctc_top_b_forward.11} parent=1 // pred_region
      _
    $region21: #{ctc_top_b_forward.11} parent=1 // pred_fallthru
      _
    // Predicated region
    $region22: #{ctc_top_b_forward.11} parent=1 // pred_check
      _
    $region23: #{ctc_top_b_forward.11} parent=1 // pred_check_branch
      %24 = sbr.rel (0) target = $region25
    $region24: #{ctc_top_b_forward.11} parent=1 // pred_region
      _
    $region25: #{ctc_top_b_forward.11} parent=1 // pred_fallthru
      _
    // Predicated region
    $region26: #{ctc_top_b_forward.11} parent=1 // pred_check
      _
    $region27: #{ctc_top_b_forward.11} parent=1 // pred_check_branch
      %26 = sbr.rel (0) target = $region29
    $region28: #{ctc_top_b_forward.11} parent=1 // pred_region
      _
    $region29: #{ctc_top_b_forward.11} parent=1 // pred_fallthru
      _
    %v28 = vld [vmem:[%s0] sm:$0xff]
    %v29 = vld [vmem:[%s0 + $0x8] sm:$0xff]
    %v30 = vpack.c.bf16 %v29, %v28
    %v31 = vld [vmem:[%s1] sm:$0xff]
    %v32 = vld [vmem:[%s1 + $0x8] sm:$0xff]
    %v33 = vpack.c.bf16 %v32, %v31
    %v34 = vld [vmem:[%s2] sm:$0xff]
    %v35 = vld [vmem:[%s2 + $0x8] sm:$0xff]
    %v36 = vpack.c.bf16 %v35, %v34
    %v37 = vld [vmem:[%s3] sm:$0xf]
    %v38 = vld [vmem:[%s3 + $0x4] sm:$0xf]
    %v39 = vld [vmem:[%s3 + $0x8] sm:$0xf]
    %v40 = vld [vmem:[%s3 + $0xc] sm:$0xf]
    %v41 = vld [vmem:[%s4] sm:$0xf]
    %v42 = vld [vmem:[%s4 + $0x4] sm:$0xf]
    %v43 = vld [vmem:[%s4 + $0x8] sm:$0xf]
    %v44 = vld [vmem:[%s4 + $0xc] sm:$0xf]
    %v49 = vunpack.c.l.b16 %v41
    %v50 = vunpack.c.l.b16 %v42
    %v51 = vunpack.c.l.b16 %v43
    %v52 = vunpack.c.l.b16 %v44
    %v53 = vpack.c.b16 %v50, %v49
    %v54 = vpack.c.b16 %v52, %v51
    %vm57 = vcmask 261120
    %v59 = vsel %vm57, %v33, 0
    %61 = vmatprep.subr.bf16.mxu0 0
    %62 = vmatpush1.bf16.msra.mxu0 %v53
    %63 = vmatprep.subr.bf16.mxu0 0
    %64 = vmatpush1.bf16.msra.mxu0 %v54
    %65 = vmatprep.subr.bf16.mxu0 0
    %66 = vmatpush1.bf16.msra.mxu0 0
    %67 = vmatprep.subr.bf16.mxu0 0
    %68 = vmatpush1.bf16.msra.mxu0 0
    %69 = vmatprep.subr.bf16.mxu0 0
    %70 = vmatpush1.bf16.msra.mxu0 0
    %71 = vmatprep.subr.bf16.mxu0 0
    %72 = vmatpush1.bf16.msra.mxu0 0
    %73 = vmatprep.subr.bf16.mxu0 0
    %74 = vmatpush1.bf16.msra.mxu0 0
    %75 = vmatprep.subr.bf16.mxu0 0
    %76 = vmatpush1.bf16.msra.mxu0 0
    %77 = vmatprep.subr.bf16.mxu0 0
    %78 = vmatpush1.bf16.msra.mxu0 0
    %79 = vmatprep.subr.bf16.mxu0 0
    %80 = vmatpush1.bf16.msra.mxu0 0
    %81 = vmatprep.subr.bf16.mxu0 0
    %82 = vmatpush1.bf16.msra.mxu0 0
    %83 = vmatprep.subr.bf16.mxu0 0
    %84 = vmatpush1.bf16.msra.mxu0 0
    %85 = vmatprep.subr.bf16.mxu0 0
    %86 = vmatpush1.bf16.msra.mxu0 0
    %87 = vmatprep.subr.bf16.mxu0 0
    %88 = vmatpush1.bf16.msra.mxu0 0
    %89 = vmatprep.subr.bf16.mxu0 0
    %90 = vmatpush1.bf16.msra.mxu0 0
    %91 = vmatprep.subr.bf16.mxu0 0
    %92 = vmatpush1.bf16.msra.mxu0 0
    %93 = vmatprep.mubr.bf16.mxu0 0
    %94 = vmatmul.mubr.bf16.gmra.mrb[0].mxu0 %v59
    %v95 = vpop.f32.mrb[0].mxu0
    %v96 = vadd.f32 0.0, %v95
    %v97 = vpop.f32.mrb[0].mxu0
    %v98 = vpop.f32.mrb[0].mxu0
    %v99 = vadd.f32 0.0, %v98
    %v100 = vpop.f32.mrb[0].mxu0
    %101 = vdwg.mxu0
    %v106 = vunpack.c.l.b16 %v37
    %v107 = vunpack.c.l.b16 %v38
    %v108 = vunpack.c.l.b16 %v39
    %v109 = vunpack.c.l.b16 %v40
    %v110 = vpack.c.b16 %v107, %v106
    %v111 = vpack.c.b16 %v109, %v108
    %v115 = vsel %vm57, %v30, 0
    %117 = vmatprep.subr.bf16.mxu0 0
    %118 = vmatpush1.bf16.msra.mxu0 %v110
    %119 = vmatprep.subr.bf16.mxu0 0
    %120 = vmatpush1.bf16.msra.mxu0 %v111
    %121 = vmatprep.subr.bf16.mxu0 0
    %122 = vmatpush1.bf16.msra.mxu0 0
    %123 = vmatprep.subr.bf16.mxu0 0
    %124 = vmatpush1.bf16.msra.mxu0 0
    %125 = vmatprep.subr.bf16.mxu0 0
    %126 = vmatpush1.bf16.msra.mxu0 0
    %127 = vmatprep.subr.bf16.mxu0 0
    %128 = vmatpush1.bf16.msra.mxu0 0
    %129 = vmatprep.subr.bf16.mxu0 0
    %130 = vmatpush1.bf16.msra.mxu0 0
    %131 = vmatprep.subr.bf16.mxu0 0
    %132 = vmatpush1.bf16.msra.mxu0 0
    %133 = vmatprep.subr.bf16.mxu0 0
    %134 = vmatpush1.bf16.msra.mxu0 0
    %135 = vmatprep.subr.bf16.mxu0 0
    %136 = vmatpush1.bf16.msra.mxu0 0
    %137 = vmatprep.subr.bf16.mxu0 0
    %138 = vmatpush1.bf16.msra.mxu0 0
    %139 = vmatprep.subr.bf16.mxu0 0
    %140 = vmatpush1.bf16.msra.mxu0 0
    %141 = vmatprep.subr.bf16.mxu0 0
    %142 = vmatpush1.bf16.msra.mxu0 0
    %143 = vmatprep.subr.bf16.mxu0 0
    %144 = vmatpush1.bf16.msra.mxu0 0
    %145 = vmatprep.subr.bf16.mxu0 0
    %146 = vmatpush1.bf16.msra.mxu0 0
    %147 = vmatprep.subr.bf16.mxu0 0
    %148 = vmatpush1.bf16.msra.mxu0 0
    %149 = vmatprep.mubr.bf16.mxu0 0
    %150 = vmatmul.mubr.bf16.gmra.mrb[0].mxu0 %v115
    %v151 = vpop.f32.mrb[0].mxu0
    %v152 = vadd.f32 %v96, %v151
    %v153 = vpop.f32.mrb[0].mxu0
    %v154 = vpop.f32.mrb[0].mxu0
    %v155 = vadd.f32 %v99, %v154
    %v156 = vpop.f32.mrb[0].mxu0
    %157 = vdwg.mxu0
    %v158 = vld [vmem:[%s5] sm:$0xf]
    %v159 = vld [vmem:[%s5 + $0x4] sm:$0xf]
    %v160 = vld [vmem:[%s5 + $0x8] sm:$0xf]
    %v161 = vld [vmem:[%s5 + $0xc] sm:$0xf]
    %v166 = vunpack.c.l.b16 %v158
    %v167 = vunpack.c.l.b16 %v159
    %v168 = vunpack.c.l.b16 %v160
    %v169 = vunpack.c.l.b16 %v161
    %v170 = vpack.c.b16 %v167, %v166
    %v171 = vpack.c.b16 %v169, %v168
    %v175 = vsel %vm57, %v36, 0
    %177 = vmatprep.subr.bf16.mxu0 0
    %178 = vmatpush1.bf16.msra.mxu0 %v170
    %179 = vmatprep.subr.bf16.mxu0 0
    %180 = vmatpush1.bf16.msra.mxu0 %v171
    %181 = vmatprep.subr.bf16.mxu0 0
    %182 = vmatpush1.bf16.msra.mxu0 0
    %183 = vmatprep.subr.bf16.mxu0 0
    %184 = vmatpush1.bf16.msra.mxu0 0
    %185 = vmatprep.subr.bf16.mxu0 0
    %186 = vmatpush1.bf16.msra.mxu0 0
    %187 = vmatprep.subr.bf16.mxu0 0
    %188 = vmatpush1.bf16.msra.mxu0 0
    %189 = vmatprep.subr.bf16.mxu0 0
    %190 = vmatpush1.bf16.msra.mxu0 0
    %191 = vmatprep.subr.bf16.mxu0 0
    %192 = vmatpush1.bf16.msra.mxu0 0
    %193 = vmatprep.subr.bf16.mxu0 0
    %194 = vmatpush1.bf16.msra.mxu0 0
    %195 = vmatprep.subr.bf16.mxu0 0
    %196 = vmatpush1.bf16.msra.mxu0 0
    %197 = vmatprep.subr.bf16.mxu0 0
    %198 = vmatpush1.bf16.msra.mxu0 0
    %199 = vmatprep.subr.bf16.mxu0 0
    %200 = vmatpush1.bf16.msra.mxu0 0
    %201 = vmatprep.subr.bf16.mxu0 0
    %202 = vmatpush1.bf16.msra.mxu0 0
    %203 = vmatprep.subr.bf16.mxu0 0
    %204 = vmatpush1.bf16.msra.mxu0 0
    %205 = vmatprep.subr.bf16.mxu0 0
    %206 = vmatpush1.bf16.msra.mxu0 0
    %207 = vmatprep.subr.bf16.mxu0 0
    %208 = vmatpush1.bf16.msra.mxu0 0
    %209 = vmatprep.mubr.bf16.mxu0 0
    %210 = vmatmul.mubr.bf16.gmra.mrb[0].mxu0 %v175
    %v211 = vpop.f32.mrb[0].mxu0
    %v212 = vadd.f32 0.0, %v211
    %v213 = vpop.f32.mrb[0].mxu0
    %v214 = vpop.f32.mrb[0].mxu0
    %v215 = vadd.f32 0.0, %v214
    %v216 = vpop.f32.mrb[0].mxu0
    %217 = vdwg.mxu0
    %v218 = vadd.f32 %v152, %v212
    %v219 = vadd.f32 %v155, %v215
    %v220 = vld [vmem:[%s6] sm:$0x1]
    %v222 = vlaneseq
    %v223 = vshrl.u32 %v222, 7
    %v224 = vsub.s32 0, %v223
    %v225 = vrot.slane %v220, %v224
    %v227 = vadd.f32 %v218, %v225
    %v228 = vadd.f32 %v219, %v225
    %229 = vst [vmem:[#allocation2] sm:$0xff] %v227
    %230 = vst [vmem:[#allocation2 + $0x8] sm:$0xff] %v228
    // Predicated region
    $region30: #{ctc_top_b_forward.11} parent=1 // pred_check
      _
    $region31: #{ctc_top_b_forward.11} parent=1 // pred_check_branch
      %232 = sbr.rel (0) target = $region33
    $region32: #{ctc_top_b_forward.11} parent=1 // pred_region
      %s234 = ssub.s32 256, 256
      %235 = vsyncadd [#allocation3], %s234
      %s236 = sshll.u32 [#allocation2], 4
      %s237 = int_to_ptr.vmem [resolvable:$true] %s236
      %242 = dma.vmem_to_hbm [thread:$0]  %s237, 256, %s7, [#allocation3], 128, 128, 8
    $region33: #{ctc_top_b_forward.11} parent=1 // pred_fallthru
      _
    // Predicated region
    $region34: #{ctc_top_b_forward.11} parent=1 // pred_check
      _
    $region35: #{ctc_top_b_forward.11} parent=1 // pred_check_branch
      %244 = sbr.rel (0) target = $region37
    $region36: #{ctc_top_b_forward.11} parent=1 // pred_region
      %245 = dma.done [#allocation3], 256
    $region37: #{ctc_top_b_forward.11} parent=1 // pred_fallthru
      _
    %246 = vsyncpa [#allocation3], 1

</llo_original>
